<compile_context>
chip_gen: v7x
topology: tpu7x:2x2x1
jax: 0.10.0
libtpu: 0.0.40
codegen_flags: <defaults>
</compile_context>

<pallas_src>
import numpy as np
import jax
import jax.numpy as jnp
from jax.experimental import pallas as pl
from jax.experimental.pallas import tpu as pltpu

# ---- synthetic hyperparameters (mirrors BayesFlow.__init__ / make_cinn) ----
THETA_DIM = 4          # theta_dim
X_DIM     = 6          # x_dim (condition), summary_net=None so x is used as-is
N_BLOCKS  = 3          # hyperparams['n_blocks']
N_LAYERS  = 2          # hyperparams['n_layers']  -> subnet has n_layers+1 Linears
N_UNITS   = 32         # hyperparams['n_units']
CLAMP     = 2.0        # AllInOneBlock default affine_clamping
LEN1      = THETA_DIM - THETA_DIM // 2   # active half (fed to subnet)
LEN2      = THETA_DIM // 2               # passive half (affine-transformed)
C_OUT     = 2 * LEN2                     # subnet output = (scale, shift)
NH        = max(N_LAYERS - 1, 1)

# Fixed per-block channel permutations (AllInOneBlock, permute_soft=False).
_perm_rng = np.random.RandomState(0)
PERMS = tuple(tuple(int(p) for p in _perm_rng.permutation(THETA_DIM))
              for _ in range(N_BLOCKS))

# Cumulative channel maps: local channel i of block b lives at carried position
# SIGMAS[b][i]; FINAL_SIGMA maps output channel -> carried position.  Static.
_sigmas = []
_sigma = list(range(THETA_DIM))
for _blk in range(N_BLOCKS):
    _sigmas.append(tuple(_sigma))
    _sigma = [_sigma[p] for p in PERMS[_blk]]
SIGMAS = tuple(_sigmas)
FINAL_SIGMA = tuple(_sigma)


def _softplus_beta_half(v):
    # torch.nn.Softplus(beta=0.5): (1 / 0.5) * log(1 + exp(0.5 * v))
    return 2.0 * jnp.log1p(jnp.exp(0.5 * v))


def bayesflow_kernel(thetaT_ref, xT_ref,
                     w0g_ref, w0c_ref, b0_ref, wh_ref, bh_ref, wog_ref, bog_ref,
                     scale_ref, off_ref, ljc_ref,
                     out_ref):
    cdt  = w0g_ref.dtype                               # MXU operand dtype (f32 or bf16)
    g    = thetaT_ref[...].astype(jnp.float32)         # (THETA_DIM, TB) carried state
    cond = xT_ref[...].astype(cdt)                     # (X_DIM, TB)
    tb   = g.shape[1]

    # Project the condition through every block's first-layer condition weights
    # with a single matmul (cond is block-invariant); first-layer bias folded in.
    cond_proj = jnp.dot(w0c_ref[...], cond,
                        preferred_element_type=jnp.float32) + b0_ref[...]

    s_acc = jnp.zeros((THETA_DIM, tb), jnp.float32)

    for blk in range(N_BLOCKS):                        # unrolled AllInOneBlock chain
        # subnet_fc: (n_layers + 1) Linear layers, ReLU after EVERY layer.
        # First layer consumes the full carried state: the passive/permuted
        # columns of w0g are zero, so this equals W0 @ x1 (no slices needed).
        a = jnp.maximum(
            jnp.dot(w0g_ref[blk], g.astype(cdt), preferred_element_type=jnp.float32)
            + cond_proj[blk * N_UNITS:(blk + 1) * N_UNITS, :], 0.0)
        for l in range(N_LAYERS - 1):
            a = jnp.maximum(
                jnp.dot(wh_ref[blk, l], a.astype(cdt), preferred_element_type=jnp.float32)
                + bh_ref[blk, l], 0.0)
        # output layer: _affine's fixed 0.1 post-scale pre-folded; rows scattered
        # and zero-padded to 2*THETA_DIM in the carried channel order.
        a = jnp.maximum(
            jnp.dot(wog_ref[blk], a.astype(cdt), preferred_element_type=jnp.float32)
            + bog_ref[blk], 0.0)                       # (2*THETA_DIM, TB)

        # affine coupling (AllInOneBlock._affine, forward), full width:
        # active rows have s=0, t=0 -> exact identity; no sublane shuffles.
        # TODO(synk): FrEIA's default clamp_activation is ATAN (0.636*atan);
        # tanh is kept (consistently with the reference) since atan has no
        # reliable Mosaic lowering.
        s = CLAMP * jnp.tanh(a[:THETA_DIM, :])         # (THETA_DIM, TB)
        t = a[THETA_DIM:, :]                           # (THETA_DIM, TB)
        g = g * jnp.exp(s) + t
        s_acc = s_acc + s                              # VPU add; reduce once at end

        # global affine, pre-scattered into the carried channel order; the
        # fixed permutation itself is only static index bookkeeping (no data moves).
        g = g * scale_ref[blk] + off_ref[blk]

    # single cross-sublane reduce for log|det J|; global-affine log-det is a
    # batch-independent constant fetched from SMEM.
    ljd = jnp.sum(s_acc, axis=0, keepdims=True) + ljc_ref[0, 0]

    # apply the composed permutation once and fuse ljd as the extra output row
    rows = [g[FINAL_SIGMA[i]:FINAL_SIGMA[i] + 1, :] for i in range(THETA_DIM)]
    out_ref[...] = jnp.concatenate(rows + [ljd], axis=0).astype(out_ref.dtype)


def pack_params(params, compute_dtype=jnp.float32):
    """Fold constants, scatter per-block weights into the carried channel order."""
    w0, b0, wh, bh, wo, bo, gs, go = params
    D = THETA_DIM

    # condition part of the first layer: one stacked (NB*NU, X_DIM) matmul
    w0c = w0[:, :, LEN1:].reshape(N_BLOCKS * N_UNITS, X_DIM)
    b0c = b0.reshape(N_BLOCKS * N_UNITS, 1)

    # theta part of the first layer: columns scattered to carried positions,
    # zero columns for the passive channels (subnet only sees x1).
    w0g = jnp.zeros((N_BLOCKS, N_UNITS, D), jnp.float32)
    for blk in range(N_BLOCKS):
        for i in range(LEN1):
            w0g = w0g.at[blk, :, SIGMAS[blk][i]].set(w0[blk, :, i])

    # output layer: (s, t) rows scattered to 2*D rows in carried order, zero rows
    # for active channels; _affine's 0.1 post-scale folded in (exact under ReLU).
    wog = jnp.zeros((N_BLOCKS, 2 * D, N_UNITS), jnp.float32)
    bog = jnp.zeros((N_BLOCKS, 2 * D, 1), jnp.float32)
    for blk in range(N_BLOCKS):
        for j in range(LEN2):
            k = SIGMAS[blk][LEN1 + j]
            wog = wog.at[blk, k].set(0.1 * wo[blk, j])
            bog = bog.at[blk, k, 0].set(0.1 * bo[blk, j])
            wog = wog.at[blk, D + k].set(0.1 * wo[blk, LEN2 + j])
            bog = bog.at[blk, D + k, 0].set(0.1 * bo[blk, LEN2 + j])

    bhk = bh[..., None]                                # (NB, NH, NU, 1)

    # global affine (SOFTPLUS activation), scattered into the carried order
    scale_l = 0.1 * _softplus_beta_half(gs)            # (NB, D), local order
    scale_g = jnp.zeros((N_BLOCKS, D, 1), jnp.float32)
    off_g = jnp.zeros((N_BLOCKS, D, 1), jnp.float32)
    for blk in range(N_BLOCKS):
        for i in range(D):
            k = SIGMAS[blk][i]
            scale_g = scale_g.at[blk, k, 0].set(scale_l[blk, i])
            off_g = off_g.at[blk, k, 0].set(go[blk, i])
    ljc = jnp.sum(jnp.log(scale_l)).reshape(1, 1)      # n_pixels == 1

    cd = compute_dtype                                 # bf16 on v5e (MXU-native)
    return (w0g.astype(cd), w0c.astype(cd), b0c, wh.astype(cd), bhk,
            wog.astype(cd), bog, scale_g, off_g, ljc)


def _round_up(v, m):
    return ((v + m - 1) // m) * m


def _pick_tile_b(batch, tile_b):
    # multiple of 256: batch sits on the MXU N axis (2x256 wide on v6e/v7x)
    tile_b = max(256, (tile_b // 256) * 256)
    if batch > 256:
        # >= 2 grid steps so v7x's two TensorCores both get work
        tile_b = min(tile_b, _round_up((batch + 1) // 2, 256))
    else:
        tile_b = 256
    return tile_b


def bayesflow_forward_fm(thetaT, xT, params, *, tile_b=512,
                         compute_dtype=jnp.float32):
    """Feature-major forward: thetaT (THETA_DIM, B), xT (X_DIM, B).
    Returns zT (THETA_DIM, B) and log|det J| (1, B) -- no pads / transposes."""
    B = thetaT.shape[1]
    packed = pack_params(params, compute_dtype)
    tb = _pick_tile_b(B, tile_b)
    n_steps = pl.cdiv(B, tb)                # ragged last block handled by Pallas

    if thetaT.dtype != jnp.float32:
        thetaT = thetaT.astype(jnp.float32)
    if xT.dtype != jnp.float32:
        xT = xT.astype(jnp.float32)

    def const_spec(arr):
        # block index never changes -> Pallas keeps the tile resident (no re-fetch)
        nd = arr.ndim
        return pl.BlockSpec(arr.shape, lambda i, _nd=nd: (0,) * _nd)

    in_specs = ([pl.BlockSpec((THETA_DIM, tb), lambda i: (0, i)),
                 pl.BlockSpec((X_DIM, tb), lambda i: (0, i))]
                + [const_spec(p) for p in packed[:-1]]
                + [pl.BlockSpec(memory_space=pltpu.MemorySpace.SMEM)])  # ljc scalar

    out = pl.pallas_call(
        bayesflow_kernel,
        out_shape=jax.ShapeDtypeStruct((THETA_DIM + 1, B), jnp.float32),
        grid_spec=pltpu.PrefetchScalarGridSpec(
            num_scalar_prefetch=0,
            grid=(n_steps,),
            in_specs=in_specs,
            out_specs=pl.BlockSpec((THETA_DIM + 1, tb), lambda i: (0, i))),
        compiler_params=pltpu.CompilerParams(
            dimension_semantics=("parallel",)),
    )(thetaT, xT, *packed)

    return out[:THETA_DIM], out[THETA_DIM:]


def bayesflow_forward(theta, x, params, *, tile_b=512, compute_dtype=jnp.float32):
    """Batch-major wrapper kept for torch-API parity.  The transposes are extra
    HBM traffic; prefer bayesflow_forward_fm inside a feature-major pipeline."""
    zT, ljT = bayesflow_forward_fm(theta.T, x.T, params, tile_b=tile_b,
                                   compute_dtype=compute_dtype)
    return zT.T, ljT.T


def init_params(key):
    """Raw parameters in torch Linear layout: weight (out_features, in_features)."""
    keys = jax.random.split(key, 6)
    c_in = LEN1 + X_DIM

    def unif(k, shape, fan_in):
        bound = 1.0 / np.sqrt(fan_in)
        return jax.random.uniform(k, shape, jnp.float32, -bound, bound)

    w0 = unif(keys[0], (N_BLOCKS, N_UNITS, c_in), c_in)
    b0 = unif(keys[1], (N_BLOCKS, N_UNITS), c_in)
    wh = unif(keys[2], (N_BLOCKS, NH, N_UNITS, N_UNITS), N_UNITS)
    bh = unif(keys[3], (N_BLOCKS, NH, N_UNITS), N_UNITS)
    wo = unif(keys[4], (N_BLOCKS, C_OUT, N_UNITS), N_UNITS)
    bo = unif(keys[5], (N_BLOCKS, C_OUT), N_UNITS)

    # AllInOneBlock default: global_affine_type='SOFTPLUS', global_affine_init=1.0
    gs0 = 2.0 * np.log(np.exp(0.5 * 10.0 * 1.0) - 1.0)
    gs = jnp.full((N_BLOCKS, THETA_DIM), gs0, jnp.float32)
    go = jnp.zeros((N_BLOCKS, THETA_DIM), jnp.float32)
    return (w0, b0, wh, bh, wo, bo, gs, go)


def reference_forward(theta, x, params):
    """Pure-JAX reference of the same cINN chain (batch-major, unfolded)."""
    w0, b0, wh, bh, wo, bo, gs, go = params
    h = theta
    ljd = jnp.zeros((theta.shape[0], 1), jnp.float32)
    perm_idx = np.asarray(PERMS)
    for blk in range(N_BLOCKS):
        x1, x2 = h[:, :LEN1], h[:, LEN1:]
        a = jnp.concatenate([x1, x], axis=1)
        a = jax.nn.relu(a @ w0[blk].T + b0[blk])
        for l in range(N_LAYERS - 1):
            a = jax.nn.relu(a @ wh[blk, l].T + bh[blk, l])
        a = jax.nn.relu(a @ wo[blk].T + bo[blk])
        a = a * 0.1
        s = CLAMP * jnp.tanh(a[:, :LEN2])
        t = a[:, LEN2:]
        x2n = x2 * jnp.exp(s) + t
        j2 = jnp.sum(s, axis=1, keepdims=True)
        out = jnp.concatenate([x1, x2n], axis=1)
        scale = 0.1 * _softplus_beta_half(gs[blk])
        out = out * scale + go[blk]
        out = out[:, perm_idx[blk]]
        ljd = ljd + j2 + jnp.sum(jnp.log(scale))
        h = out
    return h, ljd


if __name__ == "__main__":
    key = jax.random.PRNGKey(0)
    k_theta, k_x, k_params = jax.random.split(key, 3)

    B = 512                      # feature-major demo batch: 2 grid steps of 256
    thetaT = jax.random.normal(k_theta, (THETA_DIM, B), jnp.float32)
    xT_cond = jax.random.normal(k_x, (X_DIM, B), jnp.float32)
    params = init_params(k_params)

    # f32 MXU path
    zT, log_jacT = bayesflow_forward_fm(thetaT, xT_cond, params, tile_b=512)
    zT = jax.block_until_ready(zT)
    log_jacT = jax.block_until_ready(log_jacT)

    z_ref, lj_ref = reference_forward(thetaT.T, xT_cond.T, params)
    np.testing.assert_allclose(np.asarray(zT.T), np.asarray(z_ref),
                               rtol=1e-5, atol=1e-5)
    np.testing.assert_allclose(np.asarray(log_jacT.T), np.asarray(lj_ref),
                               rtol=1e-5, atol=1e-5)

    # bf16 MXU-operand path (v5e bf16-native MXU; accumulation stays f32)
    zT16, lj16 = bayesflow_forward_fm(thetaT, xT_cond, params, tile_b=512,
                                      compute_dtype=jnp.bfloat16)
    zT16 = jax.block_until_ready(zT16)
    lj16 = jax.block_until_ready(lj16)
    np.testing.assert_allclose(np.asarray(zT16.T), np.asarray(z_ref),
                               rtol=5e-2, atol=5e-2)
    np.testing.assert_allclose(np.asarray(lj16.T), np.asarray(lj_ref),
                               rtol=5e-2, atol=5e-2)

    # TODO(synk): BayesFlow.sample() (inverse/rev=True pass + torch.randn sampling)
    # is not implemented; only the forward (rev=False) hot path is kernelized.
    print("KERNEL_OK")
</pallas_src>

<mosaic_0001>
module attributes {stable_mosaic.version = 11 : i64} {
  func.func @bayesflow_kernel(%arg0: i32, %arg1: memref<4x256xf32, #tpu.memory_space<vmem>>, %arg2: memref<6x256xf32, #tpu.memory_space<vmem>>, %arg3: memref<3x32x4xf32, #tpu.memory_space<vmem>>, %arg4: memref<96x6xf32, #tpu.memory_space<vmem>>, %arg5: memref<96x1xf32, #tpu.memory_space<vmem>>, %arg6: memref<3x1x32x32xf32, #tpu.memory_space<vmem>>, %arg7: memref<3x1x32x1xf32, #tpu.memory_space<vmem>>, %arg8: memref<3x8x32xf32, #tpu.memory_space<vmem>>, %arg9: memref<3x8x1xf32, #tpu.memory_space<vmem>>, %arg10: memref<3x4x1xf32, #tpu.memory_space<vmem>>, %arg11: memref<3x4x1xf32, #tpu.memory_space<vmem>>, %arg12: memref<1x1xf32, #tpu.memory_space<smem>>, %arg13: memref<5x256xf32, #tpu.memory_space<vmem>>) attributes {dimension_semantics = [#tpu.dimension_semantics<parallel>], iteration_bounds = array<i64: 2>, scalar_prefetch = 0 : i64, scratch_operands = 0 : i64, tpu.core_type = #tpu.core_type<tc>, window_params = [{transform_indices = @transform_0, window_bounds = array<i64: 4, 256>}, {transform_indices = @transform_1, window_bounds = array<i64: 6, 256>}, {pipeline_mode = #tpu.pipeline_mode<synchronous>, transform_indices = @transform_2, window_bounds = array<i64: 3, 32, 4>}, {pipeline_mode = #tpu.pipeline_mode<synchronous>, transform_indices = @transform_3, window_bounds = array<i64: 96, 6>}, {pipeline_mode = #tpu.pipeline_mode<synchronous>, transform_indices = @transform_4, window_bounds = array<i64: 96, 1>}, {pipeline_mode = #tpu.pipeline_mode<synchronous>, transform_indices = @transform_5, window_bounds = array<i64: 3, 1, 32, 32>}, {pipeline_mode = #tpu.pipeline_mode<synchronous>, transform_indices = @transform_6, window_bounds = array<i64: 3, 1, 32, 1>}, {pipeline_mode = #tpu.pipeline_mode<synchronous>, transform_indices = @transform_7, window_bounds = array<i64: 3, 8, 32>}, {pipeline_mode = #tpu.pipeline_mode<synchronous>, transform_indices = @transform_8, window_bounds = array<i64: 3, 8, 1>}, {pipeline_mode = #tpu.pipeline_mode<synchronous>, transform_indices = @transform_9, window_bounds = array<i64: 3, 4, 1>}, {pipeline_mode = #tpu.pipeline_mode<synchronous>, transform_indices = @transform_10, window_bounds = array<i64: 3, 4, 1>}, {transform_indices = @transform_11, window_bounds = array<i64: 1, 1>}, {transform_indices = @transform_12, window_bounds = array<i64: 5, 256>}]} {
    %c0 = arith.constant 0 : index
    %c0_0 = arith.constant 0 : index
    %0 = vector.load %arg1[%c0, %c0_0] : memref<4x256xf32, #tpu.memory_space<vmem>>, vector<4x256xf32>
    %c0_1 = arith.constant 0 : index
    %c0_2 = arith.constant 0 : index
    %1 = vector.load %arg2[%c0_1, %c0_2] : memref<6x256xf32, #tpu.memory_space<vmem>>, vector<6x256xf32>
    %c0_3 = arith.constant 0 : index
    %c0_4 = arith.constant 0 : index
    %2 = vector.load %arg4[%c0_3, %c0_4] : memref<96x6xf32, #tpu.memory_space<vmem>>, vector<96x6xf32>
    %cst = arith.constant dense<0.000000e+00> : vector<96x256xf32>
    %3 = tpu.matmul %2, %1, %cst {dimension_numbers = #tpu.dot_dimension_numbers<[1], [0], [0], [1], [0, 0, 1, 1], [], []>} : vector<96x6xf32>, vector<6x256xf32>, vector<96x256xf32> -> vector<96x256xf32>
    %c0_5 = arith.constant 0 : index
    %c0_6 = arith.constant 0 : index
    %4 = vector.load %arg5[%c0_5, %c0_6] : memref<96x1xf32, #tpu.memory_space<vmem>>, vector<96x1xf32>
    %5 = vector.broadcast %4 : vector<96x1xf32> to vector<96x256xf32>
    %6 = arith.addf %3, %5 : vector<96x256xf32>
    %cst_7 = arith.constant 0.000000e+00 : f32
    %7 = vector.broadcast %cst_7 : f32 to vector<4x256xf32>
    %c0_8 = arith.constant 0 : index
    %c0_9 = arith.constant 0 : index
    %c0_10 = arith.constant 0 : index
    %8 = vector.load %arg3[%c0_8, %c0_9, %c0_10] : memref<3x32x4xf32, #tpu.memory_space<vmem>>, vector<1x32x4xf32>
    %9 = vector.shape_cast %8 : vector<1x32x4xf32> to vector<32x4xf32>
    %cst_11 = arith.constant dense<0.000000e+00> : vector<32x256xf32>
    %10 = tpu.matmul %9, %0, %cst_11 {dimension_numbers = #tpu.dot_dimension_numbers<[1], [0], [0], [1], [0, 0, 1, 1], [], []>} : vector<32x4xf32>, vector<4x256xf32>, vector<32x256xf32> -> vector<32x256xf32>
    %11 = vector.extract_strided_slice %6 {offsets = [0, 0], sizes = [32, 256], strides = [1, 1]} : vector<96x256xf32> to vector<32x256xf32>
    %12 = arith.addf %10, %11 : vector<32x256xf32>
    %cst_12 = arith.constant 0.000000e+00 : f32
    %13 = vector.broadcast %cst_12 : f32 to vector<32x256xf32>
    %14 = arith.maximumf %12, %13 : vector<32x256xf32>
    %c0_13 = arith.constant 0 : index
    %c0_14 = arith.constant 0 : index
    %c0_15 = arith.constant 0 : index
    %c0_16 = arith.constant 0 : index
    %15 = vector.load %arg6[%c0_13, %c0_14, %c0_15, %c0_16] : memref<3x1x32x32xf32, #tpu.memory_space<vmem>>, vector<1x1x32x32xf32>
    %16 = vector.shape_cast %15 : vector<1x1x32x32xf32> to vector<32x32xf32>
    %cst_17 = arith.constant dense<0.000000e+00> : vector<32x256xf32>
    %17 = tpu.matmul %16, %14, %cst_17 {dimension_numbers = #tpu.dot_dimension_numbers<[1], [0], [0], [1], [0, 0, 1, 1], [], []>} : vector<32x32xf32>, vector<32x256xf32>, vector<32x256xf32> -> vector<32x256xf32>
    %c0_18 = arith.constant 0 : index
    %c0_19 = arith.constant 0 : index
    %c0_20 = arith.constant 0 : index
    %c0_21 = arith.constant 0 : index
    %18 = vector.load %arg7[%c0_18, %c0_19, %c0_20, %c0_21] : memref<3x1x32x1xf32, #tpu.memory_space<vmem>>, vector<1x1x32x1xf32>
    %19 = vector.shape_cast %18 : vector<1x1x32x1xf32> to vector<32x1xf32>
    %20 = vector.broadcast %19 : vector<32x1xf32> to vector<32x256xf32>
    %21 = arith.addf %17, %20 : vector<32x256xf32>
    %cst_22 = arith.constant 0.000000e+00 : f32
    %22 = vector.broadcast %cst_22 : f32 to vector<32x256xf32>
    %23 = arith.maximumf %21, %22 : vector<32x256xf32>
    %c0_23 = arith.constant 0 : index
    %c0_24 = arith.constant 0 : index
    %c0_25 = arith.constant 0 : index
    %24 = vector.load %arg8[%c0_23, %c0_24, %c0_25] : memref<3x8x32xf32, #tpu.memory_space<vmem>>, vector<1x8x32xf32>
    %25 = vector.shape_cast %24 : vector<1x8x32xf32> to vector<8x32xf32>
    %cst_26 = arith.constant dense<0.000000e+00> : vector<8x256xf32>
    %26 = tpu.matmul %25, %23, %cst_26 {dimension_numbers = #tpu.dot_dimension_numbers<[1], [0], [0], [1], [0, 0, 1, 1], [], []>} : vector<8x32xf32>, vector<32x256xf32>, vector<8x256xf32> -> vector<8x256xf32>
    %c0_27 = arith.constant 0 : index
    %c0_28 = arith.constant 0 : index
    %c0_29 = arith.constant 0 : index
    %27 = vector.load %arg9[%c0_27, %c0_28, %c0_29] : memref<3x8x1xf32, #tpu.memory_space<vmem>>, vector<1x8x1xf32>
    %28 = vector.shape_cast %27 : vector<1x8x1xf32> to vector<8x1xf32>
    %29 = vector.broadcast %28 : vector<8x1xf32> to vector<8x256xf32>
    %30 = arith.addf %26, %29 : vector<8x256xf32>
    %cst_30 = arith.constant 0.000000e+00 : f32
    %31 = vector.broadcast %cst_30 : f32 to vector<8x256xf32>
    %32 = arith.maximumf %30, %31 : vector<8x256xf32>
    %33 = vector.extract_strided_slice %32 {offsets = [0, 0], sizes = [4, 256], strides = [1, 1]} : vector<8x256xf32> to vector<4x256xf32>
    %34 = math.tanh %33 : vector<4x256xf32>
    %cst_31 = arith.constant 2.000000e+00 : f32
    %35 = vector.broadcast %cst_31 : f32 to vector<4x256xf32>
    %36 = arith.mulf %35, %34 : vector<4x256xf32>
    %37 = vector.extract_strided_slice %32 {offsets = [4, 0], sizes = [4, 256], strides = [1, 1]} : vector<8x256xf32> to vector<4x256xf32>
    %38 = math.exp %36 : vector<4x256xf32>
    %39 = arith.mulf %0, %38 : vector<4x256xf32>
    %40 = arith.addf %39, %37 : vector<4x256xf32>
    %41 = arith.addf %7, %36 : vector<4x256xf32>
    %c0_32 = arith.constant 0 : index
    %c0_33 = arith.constant 0 : index
    %c0_34 = arith.constant 0 : index
    %42 = vector.load %arg10[%c0_32, %c0_33, %c0_34] : memref<3x4x1xf32, #tpu.memory_space<vmem>>, vector<1x4x1xf32>
    %43 = vector.shape_cast %42 : vector<1x4x1xf32> to vector<4x1xf32>
    %44 = vector.broadcast %43 : vector<4x1xf32> to vector<4x256xf32>
    %45 = arith.mulf %40, %44 : vector<4x256xf32>
    %c0_35 = arith.constant 0 : index
    %c0_36 = arith.constant 0 : index
    %c0_37 = arith.constant 0 : index
    %46 = vector.load %arg11[%c0_35, %c0_36, %c0_37] : memref<3x4x1xf32, #tpu.memory_space<vmem>>, vector<1x4x1xf32>
    %47 = vector.shape_cast %46 : vector<1x4x1xf32> to vector<4x1xf32>
    %48 = vector.broadcast %47 : vector<4x1xf32> to vector<4x256xf32>
    %49 = arith.addf %45, %48 : vector<4x256xf32>
    %c1 = arith.constant 1 : index
    %c0_38 = arith.constant 0 : index
    %c0_39 = arith.constant 0 : index
    %50 = vector.load %arg3[%c1, %c0_38, %c0_39] : memref<3x32x4xf32, #tpu.memory_space<vmem>>, vector<1x32x4xf32>
    %51 = vector.shape_cast %50 : vector<1x32x4xf32> to vector<32x4xf32>
    %cst_40 = arith.constant dense<0.000000e+00> : vector<32x256xf32>
    %52 = tpu.matmul %51, %49, %cst_40 {dimension_numbers = #tpu.dot_dimension_numbers<[1], [0], [0], [1], [0, 0, 1, 1], [], []>} : vector<32x4xf32>, vector<4x256xf32>, vector<32x256xf32> -> vector<32x256xf32>
    %53 = vector.extract_strided_slice %6 {offsets = [32, 0], sizes = [32, 256], strides = [1, 1]} : vector<96x256xf32> to vector<32x256xf32>
    %54 = arith.addf %52, %53 : vector<32x256xf32>
    %cst_41 = arith.constant 0.000000e+00 : f32
    %55 = vector.broadcast %cst_41 : f32 to vector<32x256xf32>
    %56 = arith.maximumf %54, %55 : vector<32x256xf32>
    %c1_42 = arith.constant 1 : index
    %c0_43 = arith.constant 0 : index
    %c0_44 = arith.constant 0 : index
    %c0_45 = arith.constant 0 : index
    %57 = vector.load %arg6[%c1_42, %c0_43, %c0_44, %c0_45] : memref<3x1x32x32xf32, #tpu.memory_space<vmem>>, vector<1x1x32x32xf32>
    %58 = vector.shape_cast %57 : vector<1x1x32x32xf32> to vector<32x32xf32>
    %cst_46 = arith.constant dense<0.000000e+00> : vector<32x256xf32>
    %59 = tpu.matmul %58, %56, %cst_46 {dimension_numbers = #tpu.dot_dimension_numbers<[1], [0], [0], [1], [0, 0, 1, 1], [], []>} : vector<32x32xf32>, vector<32x256xf32>, vector<32x256xf32> -> vector<32x256xf32>
    %c1_47 = arith.constant 1 : index
    %c0_48 = arith.constant 0 : index
    %c0_49 = arith.constant 0 : index
    %c0_50 = arith.constant 0 : index
    %60 = vector.load %arg7[%c1_47, %c0_48, %c0_49, %c0_50] : memref<3x1x32x1xf32, #tpu.memory_space<vmem>>, vector<1x1x32x1xf32>
    %61 = vector.shape_cast %60 : vector<1x1x32x1xf32> to vector<32x1xf32>
    %62 = vector.broadcast %61 : vector<32x1xf32> to vector<32x256xf32>
    %63 = arith.addf %59, %62 : vector<32x256xf32>
    %cst_51 = arith.constant 0.000000e+00 : f32
    %64 = vector.broadcast %cst_51 : f32 to vector<32x256xf32>
    %65 = arith.maximumf %63, %64 : vector<32x256xf32>
    %c1_52 = arith.constant 1 : index
    %c0_53 = arith.constant 0 : index
    %c0_54 = arith.constant 0 : index
    %66 = vector.load %arg8[%c1_52, %c0_53, %c0_54] : memref<3x8x32xf32, #tpu.memory_space<vmem>>, vector<1x8x32xf32>
    %67 = vector.shape_cast %66 : vector<1x8x32xf32> to vector<8x32xf32>
    %cst_55 = arith.constant dense<0.000000e+00> : vector<8x256xf32>
    %68 = tpu.matmul %67, %65, %cst_55 {dimension_numbers = #tpu.dot_dimension_numbers<[1], [0], [0], [1], [0, 0, 1, 1], [], []>} : vector<8x32xf32>, vector<32x256xf32>, vector<8x256xf32> -> vector<8x256xf32>
    %c1_56 = arith.constant 1 : index
    %c0_57 = arith.constant 0 : index
    %c0_58 = arith.constant 0 : index
    %69 = vector.load %arg9[%c1_56, %c0_57, %c0_58] : memref<3x8x1xf32, #tpu.memory_space<vmem>>, vector<1x8x1xf32>
    %70 = vector.shape_cast %69 : vector<1x8x1xf32> to vector<8x1xf32>
    %71 = vector.broadcast %70 : vector<8x1xf32> to vector<8x256xf32>
    %72 = arith.addf %68, %71 : vector<8x256xf32>
    %cst_59 = arith.constant 0.000000e+00 : f32
    %73 = vector.broadcast %cst_59 : f32 to vector<8x256xf32>
    %74 = arith.maximumf %72, %73 : vector<8x256xf32>
    %75 = vector.extract_strided_slice %74 {offsets = [0, 0], sizes = [4, 256], strides = [1, 1]} : vector<8x256xf32> to vector<4x256xf32>
    %76 = math.tanh %75 : vector<4x256xf32>
    %cst_60 = arith.constant 2.000000e+00 : f32
    %77 = vector.broadcast %cst_60 : f32 to vector<4x256xf32>
    %78 = arith.mulf %77, %76 : vector<4x256xf32>
    %79 = vector.extract_strided_slice %74 {offsets = [4, 0], sizes = [4, 256], strides = [1, 1]} : vector<8x256xf32> to vector<4x256xf32>
    %80 = math.exp %78 : vector<4x256xf32>
    %81 = arith.mulf %49, %80 : vector<4x256xf32>
    %82 = arith.addf %81, %79 : vector<4x256xf32>
    %83 = arith.addf %41, %78 : vector<4x256xf32>
    %c1_61 = arith.constant 1 : index
    %c0_62 = arith.constant 0 : index
    %c0_63 = arith.constant 0 : index
    %84 = vector.load %arg10[%c1_61, %c0_62, %c0_63] : memref<3x4x1xf32, #tpu.memory_space<vmem>>, vector<1x4x1xf32>
    %85 = vector.shape_cast %84 : vector<1x4x1xf32> to vector<4x1xf32>
    %86 = vector.broadcast %85 : vector<4x1xf32> to vector<4x256xf32>
    %87 = arith.mulf %82, %86 : vector<4x256xf32>
    %c1_64 = arith.constant 1 : index
    %c0_65 = arith.constant 0 : index
    %c0_66 = arith.constant 0 : index
    %88 = vector.load %arg11[%c1_64, %c0_65, %c0_66] : memref<3x4x1xf32, #tpu.memory_space<vmem>>, vector<1x4x1xf32>
    %89 = vector.shape_cast %88 : vector<1x4x1xf32> to vector<4x1xf32>
    %90 = vector.broadcast %89 : vector<4x1xf32> to vector<4x256xf32>
    %91 = arith.addf %87, %90 : vector<4x256xf32>
    %c2 = arith.constant 2 : index
    %c0_67 = arith.constant 0 : index
    %c0_68 = arith.constant 0 : index
    %92 = vector.load %arg3[%c2, %c0_67, %c0_68] : memref<3x32x4xf32, #tpu.memory_space<vmem>>, vector<1x32x4xf32>
    %93 = vector.shape_cast %92 : vector<1x32x4xf32> to vector<32x4xf32>
    %cst_69 = arith.constant dense<0.000000e+00> : vector<32x256xf32>
    %94 = tpu.matmul %93, %91, %cst_69 {dimension_numbers = #tpu.dot_dimension_numbers<[1], [0], [0], [1], [0, 0, 1, 1], [], []>} : vector<32x4xf32>, vector<4x256xf32>, vector<32x256xf32> -> vector<32x256xf32>
    %95 = vector.extract_strided_slice %6 {offsets = [64, 0], sizes = [32, 256], strides = [1, 1]} : vector<96x256xf32> to vector<32x256xf32>
    %96 = arith.addf %94, %95 : vector<32x256xf32>
    %cst_70 = arith.constant 0.000000e+00 : f32
    %97 = vector.broadcast %cst_70 : f32 to vector<32x256xf32>
    %98 = arith.maximumf %96, %97 : vector<32x256xf32>
    %c2_71 = arith.constant 2 : index
    %c0_72 = arith.constant 0 : index
    %c0_73 = arith.constant 0 : index
    %c0_74 = arith.constant 0 : index
    %99 = vector.load %arg6[%c2_71, %c0_72, %c0_73, %c0_74] : memref<3x1x32x32xf32, #tpu.memory_space<vmem>>, vector<1x1x32x32xf32>
    %100 = vector.shape_cast %99 : vector<1x1x32x32xf32> to vector<32x32xf32>
    %cst_75 = arith.constant dense<0.000000e+00> : vector<32x256xf32>
    %101 = tpu.matmul %100, %98, %cst_75 {dimension_numbers = #tpu.dot_dimension_numbers<[1], [0], [0], [1], [0, 0, 1, 1], [], []>} : vector<32x32xf32>, vector<32x256xf32>, vector<32x256xf32> -> vector<32x256xf32>
    %c2_76 = arith.constant 2 : index
    %c0_77 = arith.constant 0 : index
    %c0_78 = arith.constant 0 : index
    %c0_79 = arith.constant 0 : index
    %102 = vector.load %arg7[%c2_76, %c0_77, %c0_78, %c0_79] : memref<3x1x32x1xf32, #tpu.memory_space<vmem>>, vector<1x1x32x1xf32>
    %103 = vector.shape_cast %102 : vector<1x1x32x1xf32> to vector<32x1xf32>
    %104 = vector.broadcast %103 : vector<32x1xf32> to vector<32x256xf32>
    %105 = arith.addf %101, %104 : vector<32x256xf32>
    %cst_80 = arith.constant 0.000000e+00 : f32
    %106 = vector.broadcast %cst_80 : f32 to vector<32x256xf32>
    %107 = arith.maximumf %105, %106 : vector<32x256xf32>
    %c2_81 = arith.constant 2 : index
    %c0_82 = arith.constant 0 : index
    %c0_83 = arith.constant 0 : index
    %108 = vector.load %arg8[%c2_81, %c0_82, %c0_83] : memref<3x8x32xf32, #tpu.memory_space<vmem>>, vector<1x8x32xf32>
    %109 = vector.shape_cast %108 : vector<1x8x32xf32> to vector<8x32xf32>
    %cst_84 = arith.constant dense<0.000000e+00> : vector<8x256xf32>
    %110 = tpu.matmul %109, %107, %cst_84 {dimension_numbers = #tpu.dot_dimension_numbers<[1], [0], [0], [1], [0, 0, 1, 1], [], []>} : vector<8x32xf32>, vector<32x256xf32>, vector<8x256xf32> -> vector<8x256xf32>
    %c2_85 = arith.constant 2 : index
    %c0_86 = arith.constant 0 : index
    %c0_87 = arith.constant 0 : index
    %111 = vector.load %arg9[%c2_85, %c0_86, %c0_87] : memref<3x8x1xf32, #tpu.memory_space<vmem>>, vector<1x8x1xf32>
    %112 = vector.shape_cast %111 : vector<1x8x1xf32> to vector<8x1xf32>
    %113 = vector.broadcast %112 : vector<8x1xf32> to vector<8x256xf32>
    %114 = arith.addf %110, %113 : vector<8x256xf32>
    %cst_88 = arith.constant 0.000000e+00 : f32
    %115 = vector.broadcast %cst_88 : f32 to vector<8x256xf32>
    %116 = arith.maximumf %114, %115 : vector<8x256xf32>
    %117 = vector.extract_strided_slice %116 {offsets = [0, 0], sizes = [4, 256], strides = [1, 1]} : vector<8x256xf32> to vector<4x256xf32>
    %118 = math.tanh %117 : vector<4x256xf32>
    %cst_89 = arith.constant 2.000000e+00 : f32
    %119 = vector.broadcast %cst_89 : f32 to vector<4x256xf32>
    %120 = arith.mulf %119, %118 : vector<4x256xf32>
    %121 = vector.extract_strided_slice %116 {offsets = [4, 0], sizes = [4, 256], strides = [1, 1]} : vector<8x256xf32> to vector<4x256xf32>
    %122 = math.exp %120 : vector<4x256xf32>
    %123 = arith.mulf %91, %122 : vector<4x256xf32>
    %124 = arith.addf %123, %121 : vector<4x256xf32>
    %125 = arith.addf %83, %120 : vector<4x256xf32>
    %c2_90 = arith.constant 2 : index
    %c0_91 = arith.constant 0 : index
    %c0_92 = arith.constant 0 : index
    %126 = vector.load %arg10[%c2_90, %c0_91, %c0_92] : memref<3x4x1xf32, #tpu.memory_space<vmem>>, vector<1x4x1xf32>
    %127 = vector.shape_cast %126 : vector<1x4x1xf32> to vector<4x1xf32>
    %128 = vector.broadcast %127 : vector<4x1xf32> to vector<4x256xf32>
    %129 = arith.mulf %124, %128 : vector<4x256xf32>
    %c2_93 = arith.constant 2 : index
    %c0_94 = arith.constant 0 : index
    %c0_95 = arith.constant 0 : index
    %130 = vector.load %arg11[%c2_93, %c0_94, %c0_95] : memref<3x4x1xf32, #tpu.memory_space<vmem>>, vector<1x4x1xf32>
    %131 = vector.shape_cast %130 : vector<1x4x1xf32> to vector<4x1xf32>
    %132 = vector.broadcast %131 : vector<4x1xf32> to vector<4x256xf32>
    %133 = arith.addf %129, %132 : vector<4x256xf32>
    %cst_96 = arith.constant dense<0.000000e+00> : vector<256xf32>
    %134 = vector.multi_reduction <add>, %125, %cst_96 [0] : vector<4x256xf32> to vector<256xf32>
    %135 = vector.shape_cast %134 : vector<256xf32> to vector<1x256xf32>
    %c0_97 = arith.constant 0 : index
    %c0_98 = arith.constant 0 : index
    %136 = memref.load %arg12[%c0_97, %c0_98] : memref<1x1xf32, #tpu.memory_space<smem>>
    %137 = vector.broadcast %136 : f32 to vector<1x256xf32>
    %138 = arith.addf %135, %137 : vector<1x256xf32>
    %139 = vector.extract_strided_slice %133 {offsets = [0, 0], sizes = [1, 256], strides = [1, 1]} : vector<4x256xf32> to vector<1x256xf32>
    %140 = vector.extract_strided_slice %133 {offsets = [2, 0], sizes = [1, 256], strides = [1, 1]} : vector<4x256xf32> to vector<1x256xf32>
    %141 = vector.extract_strided_slice %133 {offsets = [3, 0], sizes = [1, 256], strides = [1, 1]} : vector<4x256xf32> to vector<1x256xf32>
    %142 = vector.extract_strided_slice %133 {offsets = [1, 0], sizes = [1, 256], strides = [1, 1]} : vector<4x256xf32> to vector<1x256xf32>
    %143 = tpu.concatenate %139, %140, %141, %142, %138 in 0 : vector<1x256xf32>, vector<1x256xf32>, vector<1x256xf32>, vector<1x256xf32>, vector<1x256xf32> -> vector<5x256xf32>
    %c0_99 = arith.constant 0 : index
    %c0_100 = arith.constant 0 : index
    %144 = vector.load %arg13[%c0_99, %c0_100] : memref<5x256xf32, #tpu.memory_space<vmem>>, vector<5x256xf32>
    tpu.vector_store %arg13[%c0_99, %c0_100], %143 {strides = array<i32>} : memref<5x256xf32, #tpu.memory_space<vmem>>, vector<5x256xf32>,
    return
  }
  func.func @transform_0(%arg0: i32) -> (i32, i32) {
    %c0_i32 = arith.constant 0 : i32
    %c0_i32_0 = arith.constant 0 : i32
    return %c0_i32, %arg0 : i32, i32
  }
  func.func @transform_1(%arg0: i32) -> (i32, i32) {
    %c0_i32 = arith.constant 0 : i32
    %c0_i32_0 = arith.constant 0 : i32
    return %c0_i32, %arg0 : i32, i32
  }
  func.func @transform_2(%arg0: i32) -> (i32, i32, i32) {
    %c0_i32 = arith.constant 0 : i32
    %c0_i32_0 = arith.constant 0 : i32
    %c0_i32_1 = arith.constant 0 : i32
    %c0_i32_2 = arith.constant 0 : i32
    return %c0_i32, %c0_i32_0, %c0_i32_1 : i32, i32, i32
  }
  func.func @transform_3(%arg0: i32) -> (i32, i32) {
    %c0_i32 = arith.constant 0 : i32
    %c0_i32_0 = arith.constant 0 : i32
    %c0_i32_1 = arith.constant 0 : i32
    return %c0_i32, %c0_i32_0 : i32, i32
  }
  func.func @transform_4(%arg0: i32) -> (i32, i32) {
    %c0_i32 = arith.constant 0 : i32
    %c0_i32_0 = arith.constant 0 : i32
    %c0_i32_1 = arith.constant 0 : i32
    return %c0_i32, %c0_i32_0 : i32, i32
  }
  func.func @transform_5(%arg0: i32) -> (i32, i32, i32, i32) {
    %c0_i32 = arith.constant 0 : i32
    %c0_i32_0 = arith.constant 0 : i32
    %c0_i32_1 = arith.constant 0 : i32
    %c0_i32_2 = arith.constant 0 : i32
    %c0_i32_3 = arith.constant 0 : i32
    return %c0_i32, %c0_i32_0, %c0_i32_1, %c0_i32_2 : i32, i32, i32, i32
  }
  func.func @transform_6(%arg0: i32) -> (i32, i32, i32, i32) {
    %c0_i32 = arith.constant 0 : i32
    %c0_i32_0 = arith.constant 0 : i32
    %c0_i32_1 = arith.constant 0 : i32
    %c0_i32_2 = arith.constant 0 : i32
    %c0_i32_3 = arith.constant 0 : i32
    return %c0_i32, %c0_i32_0, %c0_i32_1, %c0_i32_2 : i32, i32, i32, i32
  }
  func.func @transform_7(%arg0: i32) -> (i32, i32, i32) {
    %c0_i32 = arith.constant 0 : i32
    %c0_i32_0 = arith.constant 0 : i32
    %c0_i32_1 = arith.constant 0 : i32
    %c0_i32_2 = arith.constant 0 : i32
    return %c0_i32, %c0_i32_0, %c0_i32_1 : i32, i32, i32
  }
  func.func @transform_8(%arg0: i32) -> (i32, i32, i32) {
    %c0_i32 = arith.constant 0 : i32
    %c0_i32_0 = arith.constant 0 : i32
    %c0_i32_1 = arith.constant 0 : i32
    %c0_i32_2 = arith.constant 0 : i32
    return %c0_i32, %c0_i32_0, %c0_i32_1 : i32, i32, i32
  }
  func.func @transform_9(%arg0: i32) -> (i32, i32, i32) {
    %c0_i32 = arith.constant 0 : i32
    %c0_i32_0 = arith.constant 0 : i32
    %c0_i32_1 = arith.constant 0 : i32
    %c0_i32_2 = arith.constant 0 : i32
    return %c0_i32, %c0_i32_0, %c0_i32_1 : i32, i32, i32
  }
  func.func @transform_10(%arg0: i32) -> (i32, i32, i32) {
    %c0_i32 = arith.constant 0 : i32
    %c0_i32_0 = arith.constant 0 : i32
    %c0_i32_1 = arith.constant 0 : i32
    %c0_i32_2 = arith.constant 0 : i32
    return %c0_i32, %c0_i32_0, %c0_i32_1 : i32, i32, i32
  }
  func.func @transform_11(%arg0: i32) -> (i32, i32) {
    %c0_i32 = arith.constant 0 : i32
    %c0_i32_0 = arith.constant 0 : i32
    %c0_i32_1 = arith.constant 0 : i32
    return %c0_i32, %c0_i32_0 : i32, i32
  }
  func.func @transform_12(%arg0: i32) -> (i32, i32) {
    %c0_i32 = arith.constant 0 : i32
    %c0_i32_0 = arith.constant 0 : i32
    return %c0_i32, %arg0 : i32, i32
  }
}

</mosaic_0001>

<llo_original>
// kernel: tpu_custom_call.1
$region0: #{tpu_custom_call.1}
  #allocation0 [shape = 'u32[]', space=smem, size = 0x4, offset = 0x4, fixed_abs, tag = 'smem constant byte address 0x4 - core index']
  #allocation1 [shape = 'u32[144,128]{1,0:T(1,128)}', space=vmem, size = 0x12000, scoped, tag = 'internal scratch']
  #allocation2 [shape = 'f32[1,1]{1,0:T(1,128)S(6)}', space=smem, size = 0x200, scoped, tag = 'scoped memory for tpu_custom_call.1']
  %s0 = inlined_call_operand.vmem [shape: f32[4,512], index: 0, kind: input, shape index: {}]
  %s1 = inlined_call_operand.vmem [shape: f32[6,512], index: 1, kind: input, shape index: {}]
  %s2 = inlined_call_operand.vmem [shape: f32[3,32,4], index: 2, kind: input, shape index: {}]
  %s3 = inlined_call_operand.vmem [shape: f32[96,6], index: 3, kind: input, shape index: {}]
  %s4 = inlined_call_operand.vmem [shape: f32[96,1], index: 4, kind: input, shape index: {}]
  %s5 = inlined_call_operand.vmem [shape: f32[3,1,32,32], index: 5, kind: input, shape index: {}]
  %s6 = inlined_call_operand.vmem [shape: f32[3,1,32,1], index: 6, kind: input, shape index: {}]
  %s7 = inlined_call_operand.vmem [shape: f32[3,8,32], index: 7, kind: input, shape index: {}]
  %s8 = inlined_call_operand.vmem [shape: f32[3,8,1], index: 8, kind: input, shape index: {}]
  %s9 = inlined_call_operand.vmem [shape: f32[3,4,1], index: 9, kind: input, shape index: {}]
  %s10 = inlined_call_operand.vmem [shape: f32[3,4,1], index: 10, kind: input, shape index: {}]
  %s11 = inlined_call_operand.<no memory space> [shape: f32[1,1], index: 11, kind: input, shape index: {}]
  %s12 = inlined_call_operand.hbm [shape: f32[5,512], index: 12, kind: output, shape index: {}]
  %s13 = sld [smem:[#allocation0]]
  $region81: #{tpu_custom_call.1} parent=0
    _
  %s15 = ssub.s32 1, %s13
  %s16 = scalar_select 0, %s15, %s13
  %17 = sst [smem:[#allocation2]] %s11
  $region1: #{tpu_custom_call.1} parent=0
    #allocation3 [shape = 'u8[16384]{0}', space=vmem, size = 0x4000, scoped, tag = 'output window, operand 0']
    #allocation4 [shape = 's32[2]{0}', space=sflag, size = 0x8, scoped, tag = 'scoped memory for tpu_custom_call.1']
    %18 = vsyncpa [#allocation4], 0
    %s19 = scalar_lea.sflag [#allocation4], 1
    %20 = vsyncpa %s19, 0
    loop: start=0, step=1, limit=4
    $region2: #{tpu_custom_call.1} parent=1 // loop_pre_header
      _
    $region3: #{tpu_custom_call.1} parent=1 // loop_header
      %s22 = sphi 0, %s26
      %p23 = scmp.ge.s32.totalorder %s22, 4
      %s32 = sphi 0, %s34
      %s35 = sphi 0, %s32
      %s36 = sphi 0, %s35
      %s52 = sphi 0, %s36
      %s58 = sphi 0, %s60
      %s61 = sphi 0, %s58
      %s62 = sphi 0, %s61
      %s78 = sphi 0, %s62
      %s82 = sphi 0, %s82
      %s84 = sphi 0, %s82
      %s85 = sphi 0, %s84
      %s99 = sphi 0, %s85
      %s103 = sphi 0, %s103
      %s105 = sphi 0, %s103
      %s106 = sphi 0, %s105
      %s120 = sphi 0, %s106
      %s124 = sphi 0, %s124
      %s126 = sphi 0, %s124
      %s127 = sphi 0, %s126
      %s141 = sphi 0, %s127
      %s145 = sphi 0, %s145
      %s147 = sphi 0, %s145
      %s148 = sphi 0, %s147
      %s162 = sphi 0, %s148
      %s166 = sphi 0, %s166
      %s168 = sphi 0, %s166
      %s169 = sphi 0, %s168
      %s183 = sphi 0, %s169
      %s187 = sphi 0, %s187
      %s189 = sphi 0, %s187
      %s190 = sphi 0, %s189
      %s204 = sphi 0, %s190
      %s208 = sphi 0, %s208
      %s210 = sphi 0, %s208
      %s211 = sphi 0, %s210
      %s225 = sphi 0, %s211
      %s229 = sphi 0, %s229
      %s231 = sphi 0, %s229
      %s232 = sphi 0, %s231
      %s246 = sphi 0, %s232
      %s250 = sphi 0, %s250
      %s252 = sphi 0, %s250
      %s253 = sphi 0, %s252
      %s267 = sphi 0, %s253
      %s271 = sphi 0, %s271
      %s273 = sphi 0, %s271
      %s274 = sphi 0, %s273
      %s288 = sphi 0, %s274
      %s294 = sphi 0, %s296
      %s297 = sphi 0, %s294
      %s298 = sphi 0, %s297
      %s314 = sphi 0, %s298
    $region4: #{tpu_custom_call.1} parent=1 // loop_header_branch
      %25 = sbr.rel (%p23) target = $region8
    $region5: #{tpu_custom_call.1} parent=1 // loop_body
      %s27 = ssub.s32 %s22, 1
      %s28 = ssub.s32 %s22, 2
      %s29 = sadd.s32 %s22, 1
      %s30 = ssub.s32 %s22, %s29
      %p31 = scmp.eq.s32.totalorder %s30, 0
      %s33 = sadd.s32 %s32, 1
      %s34 = scalar_select %p31, %s32, %s33
      %p37 = pneg %p31
      %p38 = scmp.eq.s32.totalorder %s22, 1
      %p39 = por %p37, %p38
      %p40 = scmp.ne.s32.totalorder %s32, %s35
      %p41 = scmp.eq.s32.totalorder %s22, 0
      %p42 = por %p40, %p41
      %p43 = scmp.ne.s32.totalorder %s32, %s35
      %p44 = scmp.eq.s32.totalorder %s27, 1
      %p45 = por %p43, %p44
      %p46 = scmp.ne.s32.totalorder %s35, %s36
      %p47 = scmp.eq.s32.totalorder %s27, 0
      %p48 = por %p46, %p47
      %p49 = scmp.ne.s32.totalorder %s35, %s36
      %p50 = scmp.eq.s32.totalorder %s28, 1
      %p51 = por %p49, %p50
      %p53 = scmp.ne.s32.totalorder %s36, %s52
      %p54 = scmp.eq.s32.totalorder %s28, 0
      %p55 = por %p53, %p54
      %s56 = ssub.s32 %s22, %s29
      %p57 = scmp.eq.s32.totalorder %s56, 0
      %s59 = sadd.s32 %s58, 1
      %s60 = scalar_select %p57, %s58, %s59
      %p63 = pneg %p57
      %p64 = scmp.eq.s32.totalorder %s22, 1
      %p65 = por %p63, %p64
      %p66 = scmp.ne.s32.totalorder %s58, %s61
      %p67 = scmp.eq.s32.totalorder %s22, 0
      %p68 = por %p66, %p67
      %p69 = scmp.ne.s32.totalorder %s58, %s61
      %p70 = scmp.eq.s32.totalorder %s27, 1
      %p71 = por %p69, %p70
      %p72 = scmp.ne.s32.totalorder %s61, %s62
      %p73 = scmp.eq.s32.totalorder %s27, 0
      %p74 = por %p72, %p73
      %p75 = scmp.ne.s32.totalorder %s61, %s62
      %p76 = scmp.eq.s32.totalorder %s28, 1
      %p77 = por %p75, %p76
      %p79 = scmp.ne.s32.totalorder %s62, %s78
      %p80 = scmp.eq.s32.totalorder %s28, 0
      %p81 = por %p79, %p80
      %s83 = sadd.s32 %s82, 1
      %p86 = scmp.eq.s32.totalorder %s22, 1
      %p87 = scmp.ne.s32.totalorder %s82, %s84
      %p88 = scmp.eq.s32.totalorder %s22, 0
      %p89 = por %p87, %p88
      %p90 = scmp.ne.s32.totalorder %s82, %s84
      %p91 = scmp.eq.s32.totalorder %s27, 1
      %p92 = por %p90, %p91
      %p93 = scmp.ne.s32.totalorder %s84, %s85
      %p94 = scmp.eq.s32.totalorder %s27, 0
      %p95 = por %p93, %p94
      %p96 = scmp.ne.s32.totalorder %s84, %s85
      %p97 = scmp.eq.s32.totalorder %s28, 1
      %p98 = por %p96, %p97
      %p100 = scmp.ne.s32.totalorder %s85, %s99
      %p101 = scmp.eq.s32.totalorder %s28, 0
      %p102 = por %p100, %p101
      %s104 = sadd.s32 %s103, 1
      %p107 = scmp.eq.s32.totalorder %s22, 1
      %p108 = scmp.ne.s32.totalorder %s103, %s105
      %p109 = scmp.eq.s32.totalorder %s22, 0
      %p110 = por %p108, %p109
      %p111 = scmp.ne.s32.totalorder %s103, %s105
      %p112 = scmp.eq.s32.totalorder %s27, 1
      %p113 = por %p111, %p112
      %p114 = scmp.ne.s32.totalorder %s105, %s106
      %p115 = scmp.eq.s32.totalorder %s27, 0
      %p116 = por %p114, %p115
      %p117 = scmp.ne.s32.totalorder %s105, %s106
      %p118 = scmp.eq.s32.totalorder %s28, 1
      %p119 = por %p117, %p118
      %p121 = scmp.ne.s32.totalorder %s106, %s120
      %p122 = scmp.eq.s32.totalorder %s28, 0
      %p123 = por %p121, %p122
      %s125 = sadd.s32 %s124, 1
      %p128 = scmp.eq.s32.totalorder %s22, 1
      %p129 = scmp.ne.s32.totalorder %s124, %s126
      %p130 = scmp.eq.s32.totalorder %s22, 0
      %p131 = por %p129, %p130
      %p132 = scmp.ne.s32.totalorder %s124, %s126
      %p133 = scmp.eq.s32.totalorder %s27, 1
      %p134 = por %p132, %p133
      %p135 = scmp.ne.s32.totalorder %s126, %s127
      %p136 = scmp.eq.s32.totalorder %s27, 0
      %p137 = por %p135, %p136
      %p138 = scmp.ne.s32.totalorder %s126, %s127
      %p139 = scmp.eq.s32.totalorder %s28, 1
      %p140 = por %p138, %p139
      %p142 = scmp.ne.s32.totalorder %s127, %s141
      %p143 = scmp.eq.s32.totalorder %s28, 0
      %p144 = por %p142, %p143
      %s146 = sadd.s32 %s145, 1
      %p149 = scmp.eq.s32.totalorder %s22, 1
      %p150 = scmp.ne.s32.totalorder %s145, %s147
      %p151 = scmp.eq.s32.totalorder %s22, 0
      %p152 = por %p150, %p151
      %p153 = scmp.ne.s32.totalorder %s145, %s147
      %p154 = scmp.eq.s32.totalorder %s27, 1
      %p155 = por %p153, %p154
      %p156 = scmp.ne.s32.totalorder %s147, %s148
      %p157 = scmp.eq.s32.totalorder %s27, 0
      %p158 = por %p156, %p157
      %p159 = scmp.ne.s32.totalorder %s147, %s148
      %p160 = scmp.eq.s32.totalorder %s28, 1
      %p161 = por %p159, %p160
      %p163 = scmp.ne.s32.totalorder %s148, %s162
      %p164 = scmp.eq.s32.totalorder %s28, 0
      %p165 = por %p163, %p164
      %s167 = sadd.s32 %s166, 1
      %p170 = scmp.eq.s32.totalorder %s22, 1
      %p171 = scmp.ne.s32.totalorder %s166, %s168
      %p172 = scmp.eq.s32.totalorder %s22, 0
      %p173 = por %p171, %p172
      %p174 = scmp.ne.s32.totalorder %s166, %s168
      %p175 = scmp.eq.s32.totalorder %s27, 1
      %p176 = por %p174, %p175
      %p177 = scmp.ne.s32.totalorder %s168, %s169
      %p178 = scmp.eq.s32.totalorder %s27, 0
      %p179 = por %p177, %p178
      %p180 = scmp.ne.s32.totalorder %s168, %s169
      %p181 = scmp.eq.s32.totalorder %s28, 1
      %p182 = por %p180, %p181
      %p184 = scmp.ne.s32.totalorder %s169, %s183
      %p185 = scmp.eq.s32.totalorder %s28, 0
      %p186 = por %p184, %p185
      %s188 = sadd.s32 %s187, 1
      %p191 = scmp.eq.s32.totalorder %s22, 1
      %p192 = scmp.ne.s32.totalorder %s187, %s189
      %p193 = scmp.eq.s32.totalorder %s22, 0
      %p194 = por %p192, %p193
      %p195 = scmp.ne.s32.totalorder %s187, %s189
      %p196 = scmp.eq.s32.totalorder %s27, 1
      %p197 = por %p195, %p196
      %p198 = scmp.ne.s32.totalorder %s189, %s190
      %p199 = scmp.eq.s32.totalorder %s27, 0
      %p200 = por %p198, %p199
      %p201 = scmp.ne.s32.totalorder %s189, %s190
      %p202 = scmp.eq.s32.totalorder %s28, 1
      %p203 = por %p201, %p202
      %p205 = scmp.ne.s32.totalorder %s190, %s204
      %p206 = scmp.eq.s32.totalorder %s28, 0
      %p207 = por %p205, %p206
      %s209 = sadd.s32 %s208, 1
      %p212 = scmp.eq.s32.totalorder %s22, 1
      %p213 = scmp.ne.s32.totalorder %s208, %s210
      %p214 = scmp.eq.s32.totalorder %s22, 0
      %p215 = por %p213, %p214
      %p216 = scmp.ne.s32.totalorder %s208, %s210
      %p217 = scmp.eq.s32.totalorder %s27, 1
      %p218 = por %p216, %p217
      %p219 = scmp.ne.s32.totalorder %s210, %s211
      %p220 = scmp.eq.s32.totalorder %s27, 0
      %p221 = por %p219, %p220
      %p222 = scmp.ne.s32.totalorder %s210, %s211
      %p223 = scmp.eq.s32.totalorder %s28, 1
      %p224 = por %p222, %p223
      %p226 = scmp.ne.s32.totalorder %s211, %s225
      %p227 = scmp.eq.s32.totalorder %s28, 0
      %p228 = por %p226, %p227
      %s230 = sadd.s32 %s229, 1
      %p233 = scmp.eq.s32.totalorder %s22, 1
      %p234 = scmp.ne.s32.totalorder %s229, %s231
      %p235 = scmp.eq.s32.totalorder %s22, 0
      %p236 = por %p234, %p235
      %p237 = scmp.ne.s32.totalorder %s229, %s231
      %p238 = scmp.eq.s32.totalorder %s27, 1
      %p239 = por %p237, %p238
      %p240 = scmp.ne.s32.totalorder %s231, %s232
      %p241 = scmp.eq.s32.totalorder %s27, 0
      %p242 = por %p240, %p241
      %p243 = scmp.ne.s32.totalorder %s231, %s232
      %p244 = scmp.eq.s32.totalorder %s28, 1
      %p245 = por %p243, %p244
      %p247 = scmp.ne.s32.totalorder %s232, %s246
      %p248 = scmp.eq.s32.totalorder %s28, 0
      %p249 = por %p247, %p248
      %s251 = sadd.s32 %s250, 1
      %p254 = scmp.eq.s32.totalorder %s22, 1
      %p255 = scmp.ne.s32.totalorder %s250, %s252
      %p256 = scmp.eq.s32.totalorder %s22, 0
      %p257 = por %p255, %p256
      %p258 = scmp.ne.s32.totalorder %s250, %s252
      %p259 = scmp.eq.s32.totalorder %s27, 1
      %p260 = por %p258, %p259
      %p261 = scmp.ne.s32.totalorder %s252, %s253
      %p262 = scmp.eq.s32.totalorder %s27, 0
      %p263 = por %p261, %p262
      %p264 = scmp.ne.s32.totalorder %s252, %s253
      %p265 = scmp.eq.s32.totalorder %s28, 1
      %p266 = por %p264, %p265
      %p268 = scmp.ne.s32.totalorder %s253, %s267
      %p269 = scmp.eq.s32.totalorder %s28, 0
      %p270 = por %p268, %p269
      %s272 = sadd.s32 %s271, 1
      %p275 = scmp.eq.s32.totalorder %s22, 1
      %p276 = scmp.ne.s32.totalorder %s271, %s273
      %p277 = scmp.eq.s32.totalorder %s22, 0
      %p278 = por %p276, %p277
      %p279 = scmp.ne.s32.totalorder %s271, %s273
      %p280 = scmp.eq.s32.totalorder %s27, 1
      %p281 = por %p279, %p280
      %p282 = scmp.ne.s32.totalorder %s273, %s274
      %p283 = scmp.eq.s32.totalorder %s27, 0
      %p284 = por %p282, %p283
      %p285 = scmp.ne.s32.totalorder %s273, %s274
      %p286 = scmp.eq.s32.totalorder %s28, 1
      %p287 = por %p285, %p286
      %p289 = scmp.ne.s32.totalorder %s274, %s288
      %p290 = scmp.eq.s32.totalorder %s28, 0
      %p291 = por %p289, %p290
      %s292 = ssub.s32 %s22, %s29
      %p293 = scmp.eq.s32.totalorder %s292, 0
      %s295 = sadd.s32 %s294, 1
      %s296 = scalar_select %p293, %s294, %s295
      %p299 = pneg %p293
      %p300 = scmp.eq.s32.totalorder %s22, 1
      %p301 = por %p299, %p300
      %p302 = scmp.ne.s32.totalorder %s294, %s297
      %p303 = scmp.eq.s32.totalorder %s22, 0
      %p304 = por %p302, %p303
      %p305 = scmp.ne.s32.totalorder %s294, %s297
      %p306 = scmp.eq.s32.totalorder %s27, 1
      %p307 = por %p305, %p306
      %p308 = scmp.ne.s32.totalorder %s297, %s298
      %p309 = scmp.eq.s32.totalorder %s27, 0
      %p310 = por %p308, %p309
      %p311 = scmp.ne.s32.totalorder %s297, %s298
      %p312 = scmp.eq.s32.totalorder %s28, 1
      %p313 = por %p311, %p312
      %p315 = scmp.ne.s32.totalorder %s298, %s314
      %p316 = scmp.eq.s32.totalorder %s28, 0
      %p317 = por %p315, %p316
      %p318 = scmp.le.s32.totalorder 1, %s22
      %p319 = scmp.lt.s32.totalorder %s22, 3
      %p320 = pnand %p318, %p319
      %p321 = pneg %p320
      // Predicated region
      $region9: #{tpu_custom_call.1} parent=5 // pred_check
        _
      $region10: #{tpu_custom_call.1} parent=5 // pred_check_branch
        %323 = sbr.rel (%p320) target = $region12
      $region11: #{tpu_custom_call.1} parent=5 // pred_region
        %s324 = ssub.s32 %s22, 1
        // Predicated region
        $region13: #{tpu_custom_call.1} parent=11 // pred_check
          %p325 = pneg %p95
        $region14: #{tpu_custom_call.1} parent=11 // pred_check_branch
          %327 = sbr.rel (%p325) target = $region16
        $region15: #{tpu_custom_call.1} parent=11 // pred_region
          _
        $region16: #{tpu_custom_call.1} parent=11 // pred_fallthru
          _
        // Predicated region
        $region17: #{tpu_custom_call.1} parent=11 // pred_check
          %p328 = pneg %p116
        $region18: #{tpu_custom_call.1} parent=11 // pred_check_branch
          %330 = sbr.rel (%p328) target = $region20
        $region19: #{tpu_custom_call.1} parent=11 // pred_region
          _
        $region20: #{tpu_custom_call.1} parent=11 // pred_fallthru
          _
        // Predicated region
        $region21: #{tpu_custom_call.1} parent=11 // pred_check
          %p331 = pneg %p137
        $region22: #{tpu_custom_call.1} parent=11 // pred_check_branch
          %333 = sbr.rel (%p331) target = $region24
        $region23: #{tpu_custom_call.1} parent=11 // pred_region
          _
        $region24: #{tpu_custom_call.1} parent=11 // pred_fallthru
          _
        // Predicated region
        $region25: #{tpu_custom_call.1} parent=11 // pred_check
          %p334 = pneg %p158
        $region26: #{tpu_custom_call.1} parent=11 // pred_check_branch
          %336 = sbr.rel (%p334) target = $region28
        $region27: #{tpu_custom_call.1} parent=11 // pred_region
          _
        $region28: #{tpu_custom_call.1} parent=11 // pred_fallthru
          _
        // Predicated region
        $region29: #{tpu_custom_call.1} parent=11 // pred_check
          %p337 = pneg %p179
        $region30: #{tpu_custom_call.1} parent=11 // pred_check_branch
          %339 = sbr.rel (%p337) target = $region32
        $region31: #{tpu_custom_call.1} parent=11 // pred_region
          _
        $region32: #{tpu_custom_call.1} parent=11 // pred_fallthru
          _
        // Predicated region
        $region33: #{tpu_custom_call.1} parent=11 // pred_check
          %p340 = pneg %p200
        $region34: #{tpu_custom_call.1} parent=11 // pred_check_branch
          %342 = sbr.rel (%p340) target = $region36
        $region35: #{tpu_custom_call.1} parent=11 // pred_region
          _
        $region36: #{tpu_custom_call.1} parent=11 // pred_fallthru
          _
        // Predicated region
        $region37: #{tpu_custom_call.1} parent=11 // pred_check
          %p343 = pneg %p221
        $region38: #{tpu_custom_call.1} parent=11 // pred_check_branch
          %345 = sbr.rel (%p343) target = $region40
        $region39: #{tpu_custom_call.1} parent=11 // pred_region
          _
        $region40: #{tpu_custom_call.1} parent=11 // pred_fallthru
          _
        // Predicated region
        $region41: #{tpu_custom_call.1} parent=11 // pred_check
          %p346 = pneg %p242
        $region42: #{tpu_custom_call.1} parent=11 // pred_check_branch
          %348 = sbr.rel (%p346) target = $region44
        $region43: #{tpu_custom_call.1} parent=11 // pred_region
          _
        $region44: #{tpu_custom_call.1} parent=11 // pred_fallthru
          _
        // Predicated region
        $region45: #{tpu_custom_call.1} parent=11 // pred_check
          %p349 = pneg %p263
        $region46: #{tpu_custom_call.1} parent=11 // pred_check_branch
          %351 = sbr.rel (%p349) target = $region48
        $region47: #{tpu_custom_call.1} parent=11 // pred_region
          _
        $region48: #{tpu_custom_call.1} parent=11 // pred_fallthru
          _
        // Predicated region
        $region49: #{tpu_custom_call.1} parent=11 // pred_check
          %p352 = pneg %p284
        $region50: #{tpu_custom_call.1} parent=11 // pred_check_branch
          %354 = sbr.rel (%p352) target = $region52
        $region51: #{tpu_custom_call.1} parent=11 // pred_region
          _
        $region52: #{tpu_custom_call.1} parent=11 // pred_fallthru
          _
      $region12: #{tpu_custom_call.1} parent=5 // pred_fallthru
        _
      %p355 = scmp.lt.s32.totalorder %s22, 2
      // Predicated region
      $region53: #{tpu_custom_call.1} parent=5 // pred_check
        %p356 = pneg %p355
      $region54: #{tpu_custom_call.1} parent=5 // pred_check_branch
        %358 = sbr.rel (%p356) target = $region56
      $region55: #{tpu_custom_call.1} parent=5 // pred_region
        // Predicated region
        $region57: #{tpu_custom_call.1} parent=55 // pred_check
          %p359 = pneg %p42
        $region58: #{tpu_custom_call.1} parent=55 // pred_check_branch
          %361 = sbr.rel (%p359) target = $region60
        $region59: #{tpu_custom_call.1} parent=55 // pred_region
          %s362 = smul.u32 2, %s22
          %p363 = scmp.lt.s32.totalorder %s362, 3
          %s364 = scalar_select %p363, %s362, 3
          %s365 = smul.addr %s364, 4
          %s366 = scalar_lea.vmem %s0, %s365
          %s367 = smul.u32 2, %s22
        $region60: #{tpu_custom_call.1} parent=55 // pred_fallthru
          _
        // Predicated region
        $region61: #{tpu_custom_call.1} parent=55 // pred_check
          %p368 = pneg %p68
        $region62: #{tpu_custom_call.1} parent=55 // pred_check_branch
          %370 = sbr.rel (%p368) target = $region64
        $region63: #{tpu_custom_call.1} parent=55 // pred_region
          %s371 = smul.u32 2, %s22
          %p372 = scmp.lt.s32.totalorder %s371, 3
          %s373 = scalar_select %p372, %s371, 3
          %s374 = smul.addr %s373, 8
          %s375 = scalar_lea.vmem %s1, %s374
          %s376 = smul.u32 2, %s22
        $region64: #{tpu_custom_call.1} parent=55 // pred_fallthru
          _
      $region56: #{tpu_custom_call.1} parent=5 // pred_fallthru
        _
      %p377 = scmp.le.s32.totalorder 1, %s22
      %p378 = scmp.lt.s32.totalorder %s22, 3
      %p379 = pnand %p377, %p378
      %p380 = pneg %p379
      // Predicated region
      $region65: #{tpu_custom_call.1} parent=5 // pred_check
        _
      $region66: #{tpu_custom_call.1} parent=5 // pred_check_branch
        %382 = sbr.rel (%p379) target = $region68
      $region67: #{tpu_custom_call.1} parent=5 // pred_region
        %s383 = ssub.s32 %s22, 1
        %s384 = smul.u32 2, %s27
        %p385 = scmp.lt.s32.totalorder %s384, 3
        %s386 = scalar_select %p385, %s384, 3
        %s387 = smul.addr %s386, 4
        %s388 = scalar_lea.vmem %s0, %s387
        %p389 = pneg %p48
        %p390 = pneg %p45
        %s391 = smul.u32 2, %s27
        %p392 = scmp.lt.s32.totalorder %s391, 3
        %s393 = scalar_select %p392, %s391, 3
        %s394 = smul.addr %s393, 8
        %s395 = scalar_lea.vmem %s1, %s394
        %p396 = pneg %p74
        %p397 = pneg %p71
        %p398 = pneg %p95
        %p399 = pneg %p92
        %p400 = pneg %p116
        %p401 = pneg %p113
        %p402 = pneg %p137
        %p403 = pneg %p134
        %p404 = pneg %p158
        %p405 = pneg %p155
        %p406 = pneg %p179
        %p407 = pneg %p176
        %p408 = pneg %p200
        %p409 = pneg %p197
        %p410 = pneg %p221
        %p411 = pneg %p218
        %p412 = pneg %p242
        %p413 = pneg %p239
        %p414 = pneg %p263
        %p415 = pneg %p260
        %p416 = pneg %p284
        %p417 = pneg %p281
        %p418 = pneg %p310
        %p419 = pneg %p307
        %s420 = sand.u32 %s297, 1
        %s421 = scalar_lea.sflag [#allocation4], %s420
        %s422 = sand.u32 %s297, 1
        %s423 = smul.addr %s422, 16
        %s424 = scalar_lea.vmem [#allocation3], %s423
        %s425 = smul.u32 2, %s27
        %p426 = scmp.lt.s32.totalorder %s425, 3
        %s427 = scalar_select %p426, %s425, 3
        %s428 = smul.addr %s427, 4
        %s429 = scalar_lea.vmem %s0, %s428
        %s430 = smul.u32 2, %s27
        %s431 = smul.u32 2, %s27
        %p432 = scmp.lt.s32.totalorder %s431, 3
        %s433 = scalar_select %p432, %s431, 3
        %s434 = smul.addr %s433, 8
        %s435 = scalar_lea.vmem %s1, %s434
        %s436 = smul.u32 2, %s27
        %s437 = smul.u32 2, %s27
        %v438 = vld [vmem:[%s429] sm:$0xff]
        %v439 = vld [vmem:[%s435] sm:$0x3f]
        %v440 = vld [vmem:[%s435 + $0x8] sm:$0x3f]
        %v441 = vld [vmem:[%s3] sm:$0xff]
        %v442 = vld [vmem:[%s3 + $0x8] sm:$0xff]
        %v443 = vld [vmem:[%s3 + $0x10] sm:$0xff]
        %v444 = vld [vmem:[%s3 + $0x18] sm:$0xff]
        %v445 = vld [vmem:[%s3 + $0x20] sm:$0xff]
        %v446 = vld [vmem:[%s3 + $0x28] sm:$0xff]
        %v447 = vld [vmem:[%s3 + $0x30] sm:$0xff]
        %v448 = vld [vmem:[%s3 + $0x38] sm:$0xff]
        %v449 = vld [vmem:[%s3 + $0x40] sm:$0xff]
        %v450 = vld [vmem:[%s3 + $0x48] sm:$0xff]
        %v451 = vld [vmem:[%s3 + $0x50] sm:$0xff]
        %v452 = vld [vmem:[%s3 + $0x58] sm:$0xff]
        %v453 = vld [vmem:[%s4] sm:$0xff]
        %v454 = vld [vmem:[%s4 + $0x8] sm:$0xff]
        %v455 = vld [vmem:[%s4 + $0x10] sm:$0xff]
        %v456 = vld [vmem:[%s4 + $0x18] sm:$0xff]
        %v457 = vld [vmem:[%s4 + $0x20] sm:$0xff]
        %v458 = vld [vmem:[%s4 + $0x28] sm:$0xff]
        %v459 = vld [vmem:[%s4 + $0x30] sm:$0xff]
        %v460 = vld [vmem:[%s4 + $0x38] sm:$0xff]
        %v461 = vld [vmem:[%s4 + $0x40] sm:$0xff]
        %v462 = vld [vmem:[%s4 + $0x48] sm:$0xff]
        %v463 = vld [vmem:[%s4 + $0x50] sm:$0xff]
        %v464 = vld [vmem:[%s4 + $0x58] sm:$0xff]
        %466 = vset.pattern.permute.xlu0 0
        %467 = vperm.xlu0 %466, %v453
        %v468 = vpop.permute.xlu0 %467
        %471 = vset.pattern.permute.xlu0 0
        %472 = vperm.xlu0 %471, %v454
        %v473 = vpop.permute.xlu0 %472
        %476 = vset.pattern.permute.xlu0 0
        %477 = vperm.xlu0 %476, %v455
        %v478 = vpop.permute.xlu0 %477
        %481 = vset.pattern.permute.xlu0 0
        %482 = vperm.xlu0 %481, %v456
        %v483 = vpop.permute.xlu0 %482
        %486 = vset.pattern.permute.xlu0 0
        %487 = vperm.xlu0 %486, %v457
        %v488 = vpop.permute.xlu0 %487
        %491 = vset.pattern.permute.xlu0 0
        %492 = vperm.xlu0 %491, %v458
        %v493 = vpop.permute.xlu0 %492
        %496 = vset.pattern.permute.xlu0 0
        %497 = vperm.xlu0 %496, %v459
        %v498 = vpop.permute.xlu0 %497
        %501 = vset.pattern.permute.xlu0 0
        %502 = vperm.xlu0 %501, %v460
        %v503 = vpop.permute.xlu0 %502
        %506 = vset.pattern.permute.xlu0 0
        %507 = vperm.xlu0 %506, %v461
        %v508 = vpop.permute.xlu0 %507
        %511 = vset.pattern.permute.xlu0 0
        %512 = vperm.xlu0 %511, %v462
        %v513 = vpop.permute.xlu0 %512
        %516 = vset.pattern.permute.xlu0 0
        %517 = vperm.xlu0 %516, %v463
        %v518 = vpop.permute.xlu0 %517
        %521 = vset.pattern.permute.xlu0 0
        %522 = vperm.xlu0 %521, %v464
        %v523 = vpop.permute.xlu0 %522
        %vm525 = vcmask 48128
        %v527 = vsel %vm525, %v441, 0
        %v530 = vsel %vm525, %v442, 0
        %v533 = vsel %vm525, %v443, 0
        %v536 = vsel %vm525, %v444, 0
        %v539 = vsel %vm525, %v445, 0
        %v542 = vsel %vm525, %v446, 0
        %v545 = vsel %vm525, %v447, 0
        %v548 = vsel %vm525, %v448, 0
        %v551 = vsel %vm525, %v449, 0
        %v554 = vsel %vm525, %v450, 0
        %v557 = vsel %vm525, %v451, 0
        %v560 = vsel %vm525, %v452, 0
        %vm562 = vcmask 1045504
        %v564 = vsel %vm562, %v439, 0
        %v567 = vsel %vm562, %v440, 0
        %569 = vmatprep.subr.mxu0 %v567
        %570 = vmatpush1.msra.mxu0 %v564
        %571 = vmatprep.subr.mxu0 0.0
        %572 = vmatpush1.msra.mxu0 0.0
        %573 = vmatprep.subr.mxu0 0.0
        %574 = vmatpush1.msra.mxu0 0.0
        %575 = vmatprep.subr.mxu0 0.0
        %576 = vmatpush1.msra.mxu0 0.0
        %577 = vmatprep.subr.mxu0 0.0
        %578 = vmatpush1.msra.mxu0 0.0
        %579 = vmatprep.subr.mxu0 0.0
        %580 = vmatpush1.msra.mxu0 0.0
        %581 = vmatprep.subr.mxu0 0.0
        %582 = vmatpush1.msra.mxu0 0.0
        %583 = vmatprep.subr.mxu0 0.0
        %584 = vmatpush1.msra.mxu0 0.0
        %585 = vmatprep.subr.mxu0 0.0
        %586 = vmatpush1.msra.mxu0 0.0
        %587 = vmatprep.subr.mxu0 0.0
        %588 = vmatpush1.msra.mxu0 0.0
        %589 = vmatprep.subr.mxu0 0.0
        %590 = vmatpush1.msra.mxu0 0.0
        %591 = vmatprep.subr.mxu0 0.0
        %592 = vmatpush1.msra.mxu0 0.0
        %593 = vmatprep.subr.mxu0 0.0
        %594 = vmatpush1.msra.mxu0 0.0
        %595 = vmatprep.subr.mxu0 0.0
        %596 = vmatpush1.msra.mxu0 0.0
        %597 = vmatprep.subr.mxu0 0.0
        %598 = vmatpush1.msra.mxu0 0.0
        %599 = vmatprep.subr.mxu0 0.0
        %600 = vmatpush1.msra.mxu0 0.0
        %601 = vmatprep.subr.mxu0 0.0
        %602 = vmatpush1.msra.mxu0 0.0
        %603 = vmatprep.subr.mxu0 0.0
        %604 = vmatpush1.msra.mxu0 0.0
        %605 = vmatprep.subr.mxu0 0.0
        %606 = vmatpush1.msra.mxu0 0.0
        %607 = vmatprep.subr.mxu0 0.0
        %608 = vmatpush1.msra.mxu0 0.0
        %609 = vmatprep.subr.mxu0 0.0
        %610 = vmatpush1.msra.mxu0 0.0
        %611 = vmatprep.subr.mxu0 0.0
        %612 = vmatpush1.msra.mxu0 0.0
        %613 = vmatprep.subr.mxu0 0.0
        %614 = vmatpush1.msra.mxu0 0.0
        %615 = vmatprep.subr.mxu0 0.0
        %616 = vmatpush1.msra.mxu0 0.0
        %617 = vmatprep.subr.mxu0 0.0
        %618 = vmatpush1.msra.mxu0 0.0
        %619 = vmatprep.subr.mxu0 0.0
        %620 = vmatpush1.msra.mxu0 0.0
        %621 = vmatprep.subr.mxu0 0.0
        %622 = vmatpush1.msra.mxu0 0.0
        %623 = vmatprep.subr.mxu0 0.0
        %624 = vmatpush1.msra.mxu0 0.0
        %625 = vmatprep.subr.mxu0 0.0
        %626 = vmatpush1.msra.mxu0 0.0
        %627 = vmatprep.subr.mxu0 0.0
        %628 = vmatpush1.msra.mxu0 0.0
        %629 = vmatprep.subr.mxu0 0.0
        %630 = vmatpush1.msra.mxu0 0.0
        %631 = vmatprep.subr.mxu0 0.0
        %632 = vmatpush1.msra.mxu0 0.0
        %633 = vmatprep.mubr.f32.mxu0 0.0
        %634 = vmatmul.mubr.f32.gmra.mrb[0].mxu0 %v527
        %v635 = vpop.f32.mrb[0].mxu0
        %v636 = vadd.f32 %v468, %v635
        %v637 = vpop.f32.mrb[0].mxu0
        %v638 = vadd.f32 %v468, %v637
        %639 = vmatprep.mubr.f32.mxu0 0.0
        %640 = vmatmul.mubr.f32.gmra.mrb[0].mxu0 %v530
        %v641 = vpop.f32.mrb[0].mxu0
        %v642 = vadd.f32 %v473, %v641
        %v643 = vpop.f32.mrb[0].mxu0
        %v644 = vadd.f32 %v473, %v643
        %645 = vmatprep.mubr.f32.mxu0 0.0
        %646 = vmatmul.mubr.f32.gmra.mrb[0].mxu0 %v533
        %v647 = vpop.f32.mrb[0].mxu0
        %v648 = vadd.f32 %v478, %v647
        %v649 = vpop.f32.mrb[0].mxu0
        %v650 = vadd.f32 %v478, %v649
        %651 = vmatprep.mubr.f32.mxu0 0.0
        %652 = vmatmul.mubr.f32.gmra.mrb[0].mxu0 %v536
        %v653 = vpop.f32.mrb[0].mxu0
        %v654 = vadd.f32 %v483, %v653
        %v655 = vpop.f32.mrb[0].mxu0
        %v656 = vadd.f32 %v483, %v655
        %657 = vmatprep.mubr.f32.mxu0 0.0
        %658 = vmatmul.mubr.f32.gmra.mrb[0].mxu0 %v539
        %v659 = vpop.f32.mrb[0].mxu0
        %v660 = vadd.f32 %v488, %v659
        %v661 = vpop.f32.mrb[0].mxu0
        %v662 = vadd.f32 %v488, %v661
        %663 = vmatprep.mubr.f32.mxu0 0.0
        %664 = vmatmul.mubr.f32.gmra.mrb[0].mxu0 %v542
        %v665 = vpop.f32.mrb[0].mxu0
        %v666 = vadd.f32 %v493, %v665
        %v667 = vpop.f32.mrb[0].mxu0
        %v668 = vadd.f32 %v493, %v667
        %669 = vmatprep.mubr.f32.mxu0 0.0
        %670 = vmatmul.mubr.f32.gmra.mrb[0].mxu0 %v545
        %v671 = vpop.f32.mrb[0].mxu0
        %v672 = vadd.f32 %v498, %v671
        %v673 = vpop.f32.mrb[0].mxu0
        %v674 = vadd.f32 %v498, %v673
        %675 = vmatprep.mubr.f32.mxu0 0.0
        %676 = vmatmul.mubr.f32.gmra.mrb[0].mxu0 %v548
        %v677 = vpop.f32.mrb[0].mxu0
        %v678 = vadd.f32 %v503, %v677
        %v679 = vpop.f32.mrb[0].mxu0
        %v680 = vadd.f32 %v503, %v679
        %681 = vmatprep.mubr.f32.mxu0 0.0
        %682 = vmatmul.mubr.f32.gmra.mrb[0].mxu0 %v551
        %v683 = vpop.f32.mrb[0].mxu0
        %v684 = vadd.f32 %v508, %v683
        %v685 = vpop.f32.mrb[0].mxu0
        %v686 = vadd.f32 %v508, %v685
        %687 = vmatprep.mubr.f32.mxu0 0.0
        %688 = vmatmul.mubr.f32.gmra.mrb[0].mxu0 %v554
        %v689 = vpop.f32.mrb[0].mxu0
        %v690 = vadd.f32 %v513, %v689
        %v691 = vpop.f32.mrb[0].mxu0
        %v692 = vadd.f32 %v513, %v691
        %693 = vmatprep.mubr.f32.mxu0 0.0
        %694 = vmatmul.mubr.f32.gmra.mrb[0].mxu0 %v557
        %v695 = vpop.f32.mrb[0].mxu0
        %v696 = vadd.f32 %v518, %v695
        %v697 = vpop.f32.mrb[0].mxu0
        %v698 = vadd.f32 %v518, %v697
        %699 = vmatprep.mubr.f32.mxu0 0.0
        %700 = vmatmul.mubr.f32.gmra.mrb[0].mxu0 %v560
        %v701 = vpop.f32.mrb[0].mxu0
        %v702 = vadd.f32 %v523, %v701
        %v703 = vpop.f32.mrb[0].mxu0
        %v704 = vadd.f32 %v523, %v703
        %705 = vdwg.mxu0
        %v706 = vld [vmem:[%s2] sm:$0xff]
        %v707 = vld [vmem:[%s2 + $0x8] sm:$0xff]
        %v708 = vld [vmem:[%s2 + $0x10] sm:$0xff]
        %v709 = vld [vmem:[%s2 + $0x18] sm:$0xff]
        %v711 = vcombine.high %v438, %v438
        %vm712 = vcmask 31744
        %v714 = vsel %vm712, %v706, 0
        %v717 = vsel %vm712, %v707, 0
        %v720 = vsel %vm712, %v708, 0
        %v723 = vsel %vm712, %v709, 0
        %vm725 = vcmask 1043456
        %v726 = vsel %vm725, %v438, 0
        %v728 = vsel %vm725, %v711, 0
        %730 = vmatprep.subr.mxu0 %v728
        %731 = vmatpush1.msra.mxu0 %v726
        %732 = vmatprep.subr.mxu0 0.0
        %733 = vmatpush1.msra.mxu0 0.0
        %734 = vmatprep.subr.mxu0 0.0
        %735 = vmatpush1.msra.mxu0 0.0
        %736 = vmatprep.subr.mxu0 0.0
        %737 = vmatpush1.msra.mxu0 0.0
        %738 = vmatprep.subr.mxu0 0.0
        %739 = vmatpush1.msra.mxu0 0.0
        %740 = vmatprep.subr.mxu0 0.0
        %741 = vmatpush1.msra.mxu0 0.0
        %742 = vmatprep.subr.mxu0 0.0
        %743 = vmatpush1.msra.mxu0 0.0
        %744 = vmatprep.subr.mxu0 0.0
        %745 = vmatpush1.msra.mxu0 0.0
        %746 = vmatprep.subr.mxu0 0.0
        %747 = vmatpush1.msra.mxu0 0.0
        %748 = vmatprep.subr.mxu0 0.0
        %749 = vmatpush1.msra.mxu0 0.0
        %750 = vmatprep.subr.mxu0 0.0
        %751 = vmatpush1.msra.mxu0 0.0
        %752 = vmatprep.subr.mxu0 0.0
        %753 = vmatpush1.msra.mxu0 0.0
        %754 = vmatprep.subr.mxu0 0.0
        %755 = vmatpush1.msra.mxu0 0.0
        %756 = vmatprep.subr.mxu0 0.0
        %757 = vmatpush1.msra.mxu0 0.0
        %758 = vmatprep.subr.mxu0 0.0
        %759 = vmatpush1.msra.mxu0 0.0
        %760 = vmatprep.subr.mxu0 0.0
        %761 = vmatpush1.msra.mxu0 0.0
        %762 = vmatprep.subr.mxu0 0.0
        %763 = vmatpush1.msra.mxu0 0.0
        %764 = vmatprep.subr.mxu0 0.0
        %765 = vmatpush1.msra.mxu0 0.0
        %766 = vmatprep.subr.mxu0 0.0
        %767 = vmatpush1.msra.mxu0 0.0
        %768 = vmatprep.subr.mxu0 0.0
        %769 = vmatpush1.msra.mxu0 0.0
        %770 = vmatprep.subr.mxu0 0.0
        %771 = vmatpush1.msra.mxu0 0.0
        %772 = vmatprep.subr.mxu0 0.0
        %773 = vmatpush1.msra.mxu0 0.0
        %774 = vmatprep.subr.mxu0 0.0
        %775 = vmatpush1.msra.mxu0 0.0
        %776 = vmatprep.subr.mxu0 0.0
        %777 = vmatpush1.msra.mxu0 0.0
        %778 = vmatprep.subr.mxu0 0.0
        %779 = vmatpush1.msra.mxu0 0.0
        %780 = vmatprep.subr.mxu0 0.0
        %781 = vmatpush1.msra.mxu0 0.0
        %782 = vmatprep.subr.mxu0 0.0
        %783 = vmatpush1.msra.mxu0 0.0
        %784 = vmatprep.subr.mxu0 0.0
        %785 = vmatpush1.msra.mxu0 0.0
        %786 = vmatprep.subr.mxu0 0.0
        %787 = vmatpush1.msra.mxu0 0.0
        %788 = vmatprep.subr.mxu0 0.0
        %789 = vmatpush1.msra.mxu0 0.0
        %790 = vmatprep.subr.mxu0 0.0
        %791 = vmatpush1.msra.mxu0 0.0
        %792 = vmatprep.subr.mxu0 0.0
        %793 = vmatpush1.msra.mxu0 0.0
        %794 = vmatprep.mubr.f32.mxu0 0.0
        %795 = vmatmul.mubr.f32.gmra.mrb[0].mxu0 %v714
        %v796 = vpop.f32.mrb[0].mxu0
        %v797 = vadd.f32 %v636, %v796
        %v798 = vpop.f32.mrb[0].mxu0
        %v799 = vadd.f32 %v638, %v798
        %800 = vmatprep.mubr.f32.mxu0 0.0
        %801 = vmatmul.mubr.f32.gmra.mrb[0].mxu0 %v717
        %v802 = vpop.f32.mrb[0].mxu0
        %v803 = vadd.f32 %v642, %v802
        %v804 = vpop.f32.mrb[0].mxu0
        %v805 = vadd.f32 %v644, %v804
        %806 = vmatprep.mubr.f32.mxu0 0.0
        %807 = vmatmul.mubr.f32.gmra.mrb[0].mxu0 %v720
        %v808 = vpop.f32.mrb[0].mxu0
        %v809 = vadd.f32 %v648, %v808
        %v810 = vpop.f32.mrb[0].mxu0
        %v811 = vadd.f32 %v650, %v810
        %812 = vmatprep.mubr.f32.mxu0 0.0
        %813 = vmatmul.mubr.f32.gmra.mrb[0].mxu0 %v723
        %v814 = vpop.f32.mrb[0].mxu0
        %v815 = vadd.f32 %v654, %v814
        %v816 = vpop.f32.mrb[0].mxu0
        %v817 = vadd.f32 %v656, %v816
        %818 = vdwg.mxu0
        %v819 = vmax.f32 %v797, 0.0
        %v820 = vmax.f32 %v799, 0.0
        %v821 = vmax.f32 %v803, 0.0
        %v822 = vmax.f32 %v805, 0.0
        %v823 = vmax.f32 %v809, 0.0
        %v824 = vmax.f32 %v811, 0.0
        %v825 = vmax.f32 %v815, 0.0
        %v826 = vmax.f32 %v817, 0.0
        %v827 = vld [vmem:[%s5] sm:$0xff]
        %v828 = vld [vmem:[%s5 + $0x8] sm:$0xff]
        %v829 = vld [vmem:[%s5 + $0x10] sm:$0xff]
        %v830 = vld [vmem:[%s5 + $0x18] sm:$0xff]
        %v831 = vld [vmem:[%s6] sm:$0xff]
        %v832 = vld [vmem:[%s6 + $0x8] sm:$0xff]
        %v833 = vld [vmem:[%s6 + $0x10] sm:$0xff]
        %v834 = vld [vmem:[%s6 + $0x18] sm:$0xff]
        %836 = vset.pattern.permute.xlu0 0
        %837 = vperm.xlu0 %836, %v831
        %v838 = vpop.permute.xlu0 %837
        %841 = vset.pattern.permute.xlu0 0
        %842 = vperm.xlu0 %841, %v832
        %v843 = vpop.permute.xlu0 %842
        %846 = vset.pattern.permute.xlu0 0
        %847 = vperm.xlu0 %846, %v833
        %v848 = vpop.permute.xlu0 %847
        %851 = vset.pattern.permute.xlu0 0
        %852 = vperm.xlu0 %851, %v834
        %v853 = vpop.permute.xlu0 %852
        %vm855 = vcmask 261120
        %v857 = vsel %vm855, %v827, 0
        %v860 = vsel %vm855, %v828, 0
        %v863 = vsel %vm855, %v829, 0
        %v866 = vsel %vm855, %v830, 0
        %868 = vmatprep.subr.mxu0 %v820
        %869 = vmatpush1.msra.mxu0 %v819
        %870 = vmatprep.subr.mxu0 %v822
        %871 = vmatpush1.msra.mxu0 %v821
        %872 = vmatprep.subr.mxu0 %v824
        %873 = vmatpush1.msra.mxu0 %v823
        %874 = vmatprep.subr.mxu0 %v826
        %875 = vmatpush1.msra.mxu0 %v825
        %876 = vmatprep.subr.mxu0 0.0
        %877 = vmatpush1.msra.mxu0 0.0
        %878 = vmatprep.subr.mxu0 0.0
        %879 = vmatpush1.msra.mxu0 0.0
        %880 = vmatprep.subr.mxu0 0.0
        %881 = vmatpush1.msra.mxu0 0.0
        %882 = vmatprep.subr.mxu0 0.0
        %883 = vmatpush1.msra.mxu0 0.0
        %884 = vmatprep.subr.mxu0 0.0
        %885 = vmatpush1.msra.mxu0 0.0
        %886 = vmatprep.subr.mxu0 0.0
        %887 = vmatpush1.msra.mxu0 0.0
        %888 = vmatprep.subr.mxu0 0.0
        %889 = vmatpush1.msra.mxu0 0.0
        %890 = vmatprep.subr.mxu0 0.0
        %891 = vmatpush1.msra.mxu0 0.0
        %892 = vmatprep.subr.mxu0 0.0
        %893 = vmatpush1.msra.mxu0 0.0
        %894 = vmatprep.subr.mxu0 0.0
        %895 = vmatpush1.msra.mxu0 0.0
        %896 = vmatprep.subr.mxu0 0.0
        %897 = vmatpush1.msra.mxu0 0.0
        %898 = vmatprep.subr.mxu0 0.0
        %899 = vmatpush1.msra.mxu0 0.0
        %900 = vmatprep.subr.mxu0 0.0
        %901 = vmatpush1.msra.mxu0 0.0
        %902 = vmatprep.subr.mxu0 0.0
        %903 = vmatpush1.msra.mxu0 0.0
        %904 = vmatprep.subr.mxu0 0.0
        %905 = vmatpush1.msra.mxu0 0.0
        %906 = vmatprep.subr.mxu0 0.0
        %907 = vmatpush1.msra.mxu0 0.0
        %908 = vmatprep.subr.mxu0 0.0
        %909 = vmatpush1.msra.mxu0 0.0
        %910 = vmatprep.subr.mxu0 0.0
        %911 = vmatpush1.msra.mxu0 0.0
        %912 = vmatprep.subr.mxu0 0.0
        %913 = vmatpush1.msra.mxu0 0.0
        %914 = vmatprep.subr.mxu0 0.0
        %915 = vmatpush1.msra.mxu0 0.0
        %916 = vmatprep.subr.mxu0 0.0
        %917 = vmatpush1.msra.mxu0 0.0
        %918 = vmatprep.subr.mxu0 0.0
        %919 = vmatpush1.msra.mxu0 0.0
        %920 = vmatprep.subr.mxu0 0.0
        %921 = vmatpush1.msra.mxu0 0.0
        %922 = vmatprep.subr.mxu0 0.0
        %923 = vmatpush1.msra.mxu0 0.0
        %924 = vmatprep.subr.mxu0 0.0
        %925 = vmatpush1.msra.mxu0 0.0
        %926 = vmatprep.subr.mxu0 0.0
        %927 = vmatpush1.msra.mxu0 0.0
        %928 = vmatprep.subr.mxu0 0.0
        %929 = vmatpush1.msra.mxu0 0.0
        %930 = vmatprep.subr.mxu0 0.0
        %931 = vmatpush1.msra.mxu0 0.0
        %932 = vmatprep.mubr.f32.mxu0 0.0
        %933 = vmatmul.mubr.f32.gmra.mrb[0].mxu0 %v857
        %v934 = vpop.f32.mrb[0].mxu0
        %v935 = vadd.f32 %v838, %v934
        %v936 = vpop.f32.mrb[0].mxu0
        %v937 = vadd.f32 %v838, %v936
        %938 = vmatprep.mubr.f32.mxu0 0.0
        %939 = vmatmul.mubr.f32.gmra.mrb[0].mxu0 %v860
        %v940 = vpop.f32.mrb[0].mxu0
        %v941 = vadd.f32 %v843, %v940
        %v942 = vpop.f32.mrb[0].mxu0
        %v943 = vadd.f32 %v843, %v942
        %944 = vmatprep.mubr.f32.mxu0 0.0
        %945 = vmatmul.mubr.f32.gmra.mrb[0].mxu0 %v863
        %v946 = vpop.f32.mrb[0].mxu0
        %v947 = vadd.f32 %v848, %v946
        %v948 = vpop.f32.mrb[0].mxu0
        %v949 = vadd.f32 %v848, %v948
        %950 = vmatprep.mubr.f32.mxu0 0.0
        %951 = vmatmul.mubr.f32.gmra.mrb[0].mxu0 %v866
        %v952 = vpop.f32.mrb[0].mxu0
        %v953 = vadd.f32 %v853, %v952
        %v954 = vpop.f32.mrb[0].mxu0
        %v955 = vadd.f32 %v853, %v954
        %956 = vdwg.mxu0
        %v957 = vmax.f32 %v935, 0.0
        %v958 = vmax.f32 %v937, 0.0
        %v959 = vmax.f32 %v941, 0.0
        %v960 = vmax.f32 %v943, 0.0
        %v961 = vmax.f32 %v947, 0.0
        %v962 = vmax.f32 %v949, 0.0
        %v963 = vmax.f32 %v953, 0.0
        %v964 = vmax.f32 %v955, 0.0
        %v965 = vld [vmem:[%s7] sm:$0xff]
        %v966 = vld [vmem:[%s8] sm:$0xff]
        %968 = vset.pattern.permute.xlu0 0
        %969 = vperm.xlu0 %968, %v966
        %v970 = vpop.permute.xlu0 %969
        %v973 = vsel %vm855, %v965, 0
        %975 = vmatprep.subr.mxu0 %v958
        %976 = vmatpush1.msra.mxu0 %v957
        %977 = vmatprep.subr.mxu0 %v960
        %978 = vmatpush1.msra.mxu0 %v959
        %979 = vmatprep.subr.mxu0 %v962
        %980 = vmatpush1.msra.mxu0 %v961
        %981 = vmatprep.subr.mxu0 %v964
        %982 = vmatpush1.msra.mxu0 %v963
        %983 = vmatprep.subr.mxu0 0.0
        %984 = vmatpush1.msra.mxu0 0.0
        %985 = vmatprep.subr.mxu0 0.0
        %986 = vmatpush1.msra.mxu0 0.0
        %987 = vmatprep.subr.mxu0 0.0
        %988 = vmatpush1.msra.mxu0 0.0
        %989 = vmatprep.subr.mxu0 0.0
        %990 = vmatpush1.msra.mxu0 0.0
        %991 = vmatprep.subr.mxu0 0.0
        %992 = vmatpush1.msra.mxu0 0.0
        %993 = vmatprep.subr.mxu0 0.0
        %994 = vmatpush1.msra.mxu0 0.0
        %995 = vmatprep.subr.mxu0 0.0
        %996 = vmatpush1.msra.mxu0 0.0
        %997 = vmatprep.subr.mxu0 0.0
        %998 = vmatpush1.msra.mxu0 0.0
        %999 = vmatprep.subr.mxu0 0.0
        %1000 = vmatpush1.msra.mxu0 0.0
        %1001 = vmatprep.subr.mxu0 0.0
        %1002 = vmatpush1.msra.mxu0 0.0
        %1003 = vmatprep.subr.mxu0 0.0
        %1004 = vmatpush1.msra.mxu0 0.0
        %1005 = vmatprep.subr.mxu0 0.0
        %1006 = vmatpush1.msra.mxu0 0.0
        %1007 = vmatprep.subr.mxu0 0.0
        %1008 = vmatpush1.msra.mxu0 0.0
        %1009 = vmatprep.subr.mxu0 0.0
        %1010 = vmatpush1.msra.mxu0 0.0
        %1011 = vmatprep.subr.mxu0 0.0
        %1012 = vmatpush1.msra.mxu0 0.0
        %1013 = vmatprep.subr.mxu0 0.0
        %1014 = vmatpush1.msra.mxu0 0.0
        %1015 = vmatprep.subr.mxu0 0.0
        %1016 = vmatpush1.msra.mxu0 0.0
        %1017 = vmatprep.subr.mxu0 0.0
        %1018 = vmatpush1.msra.mxu0 0.0
        %1019 = vmatprep.subr.mxu0 0.0
        %1020 = vmatpush1.msra.mxu0 0.0
        %1021 = vmatprep.subr.mxu0 0.0
        %1022 = vmatpush1.msra.mxu0 0.0
        %1023 = vmatprep.subr.mxu0 0.0
        %1024 = vmatpush1.msra.mxu0 0.0
        %1025 = vmatprep.subr.mxu0 0.0
        %1026 = vmatpush1.msra.mxu0 0.0
        %1027 = vmatprep.subr.mxu0 0.0
        %1028 = vmatpush1.msra.mxu0 0.0
        %1029 = vmatprep.subr.mxu0 0.0
        %1030 = vmatpush1.msra.mxu0 0.0
        %1031 = vmatprep.subr.mxu0 0.0
        %1032 = vmatpush1.msra.mxu0 0.0
        %1033 = vmatprep.subr.mxu0 0.0
        %1034 = vmatpush1.msra.mxu0 0.0
        %1035 = vmatprep.subr.mxu0 0.0
        %1036 = vmatpush1.msra.mxu0 0.0
        %1037 = vmatprep.subr.mxu0 0.0
        %1038 = vmatpush1.msra.mxu0 0.0
        %1039 = vmatprep.mubr.f32.mxu0 0.0
        %1040 = vmatmul.mubr.f32.gmra.mrb[0].mxu0 %v973
        %v1041 = vpop.f32.mrb[0].mxu0
        %v1042 = vadd.f32 %v970, %v1041
        %v1043 = vpop.f32.mrb[0].mxu0
        %v1044 = vadd.f32 %v970, %v1043
        %1045 = vdwg.mxu0
        %v1046 = vmax.f32 %v1042, 0.0
        %v1047 = vmax.f32 %v1044, 0.0
        %v1048 = vtanh.pop %v1046
        %v1049 = vtanh.pop %v1047
        %v1050 = vmul.f32 %v1048, 2.0
        %v1051 = vmul.f32 %v1049, 2.0
        %v1052 = vmul.f32 %v1050, 1.442695
        %v1053 = vpow.pop %v1052
        %v1054 = vmul.f32 %v1051, 1.442695
        %v1055 = vpow.pop %v1054
        %v1058 = vcombine.low %v1053, %v1055
        %v1060 = vmul.f32 %v438, %v1058
        %v1063 = vcombine.high %v1046, %v1047
        %v1065 = vadd.f32 %v1060, %v1063
        %v1066 = vadd.f32 %v1050, 0.0
        %v1067 = vadd.f32 %v1051, 0.0
        %v1068 = vld [vmem:[%s9] sm:$0xf]
        %1070 = vset.pattern.permute.xlu0 0
        %1071 = vperm.xlu0 %1070, %v1068
        %v1072 = vpop.permute.xlu0 %1071
        %v1074 = vunpack.c.l.s4 839922192
        %v1075 = vunpack.c.0.s8 %v1074
        %v1076 = vlaneseq
        %v1077 = vshrl.u32 %v1076, 7
        %v1078 = vsub.s32 %v1075, %v1077
        %v1079 = vrot.slane %v1072, %v1078
        %v1081 = vmul.f32 %v1065, %v1079
        %v1082 = vld [vmem:[%s10] sm:$0xf]
        %1084 = vset.pattern.permute.xlu0 0
        %1085 = vperm.xlu0 %1084, %v1082
        %v1086 = vpop.permute.xlu0 %1085
        %v1088 = vunpack.c.l.s4 839922192
        %v1089 = vunpack.c.0.s8 %v1088
        %v1090 = vlaneseq
        %v1091 = vshrl.u32 %v1090, 7
        %v1092 = vsub.s32 %v1089, %v1091
        %v1093 = vrot.slane %v1086, %v1092
        %v1095 = vadd.f32 %v1081, %v1093
        %s1096 = scalar_lea.vmem %s2, 32
        %v1097 = vld [vmem:[%s1096] sm:$0xff]
        %v1098 = vld [vmem:[%s1096 + $0x8] sm:$0xff]
        %v1099 = vld [vmem:[%s1096 + $0x10] sm:$0xff]
        %v1100 = vld [vmem:[%s1096 + $0x18] sm:$0xff]
        %v1102 = vcombine.high %v1095, %v1095
        %v1104 = vsel %vm712, %v1097, 0
        %v1107 = vsel %vm712, %v1098, 0
        %v1110 = vsel %vm712, %v1099, 0
        %v1113 = vsel %vm712, %v1100, 0
        %v1115 = vsel %vm725, %v1095, 0
        %v1117 = vsel %vm725, %v1102, 0
        %1119 = vmatprep.subr.mxu0 %v1117
        %1120 = vmatpush1.msra.mxu0 %v1115
        %1121 = vmatprep.subr.mxu0 0.0
        %1122 = vmatpush1.msra.mxu0 0.0
        %1123 = vmatprep.subr.mxu0 0.0
        %1124 = vmatpush1.msra.mxu0 0.0
        %1125 = vmatprep.subr.mxu0 0.0
        %1126 = vmatpush1.msra.mxu0 0.0
        %1127 = vmatprep.subr.mxu0 0.0
        %1128 = vmatpush1.msra.mxu0 0.0
        %1129 = vmatprep.subr.mxu0 0.0
        %1130 = vmatpush1.msra.mxu0 0.0
        %1131 = vmatprep.subr.mxu0 0.0
        %1132 = vmatpush1.msra.mxu0 0.0
        %1133 = vmatprep.subr.mxu0 0.0
        %1134 = vmatpush1.msra.mxu0 0.0
        %1135 = vmatprep.subr.mxu0 0.0
        %1136 = vmatpush1.msra.mxu0 0.0
        %1137 = vmatprep.subr.mxu0 0.0
        %1138 = vmatpush1.msra.mxu0 0.0
        %1139 = vmatprep.subr.mxu0 0.0
        %1140 = vmatpush1.msra.mxu0 0.0
        %1141 = vmatprep.subr.mxu0 0.0
        %1142 = vmatpush1.msra.mxu0 0.0
        %1143 = vmatprep.subr.mxu0 0.0
        %1144 = vmatpush1.msra.mxu0 0.0
        %1145 = vmatprep.subr.mxu0 0.0
        %1146 = vmatpush1.msra.mxu0 0.0
        %1147 = vmatprep.subr.mxu0 0.0
        %1148 = vmatpush1.msra.mxu0 0.0
        %1149 = vmatprep.subr.mxu0 0.0
        %1150 = vmatpush1.msra.mxu0 0.0
        %1151 = vmatprep.subr.mxu0 0.0
        %1152 = vmatpush1.msra.mxu0 0.0
        %1153 = vmatprep.subr.mxu0 0.0
        %1154 = vmatpush1.msra.mxu0 0.0
        %1155 = vmatprep.subr.mxu0 0.0
        %1156 = vmatpush1.msra.mxu0 0.0
        %1157 = vmatprep.subr.mxu0 0.0
        %1158 = vmatpush1.msra.mxu0 0.0
        %1159 = vmatprep.subr.mxu0 0.0
        %1160 = vmatpush1.msra.mxu0 0.0
        %1161 = vmatprep.subr.mxu0 0.0
        %1162 = vmatpush1.msra.mxu0 0.0
        %1163 = vmatprep.subr.mxu0 0.0
        %1164 = vmatpush1.msra.mxu0 0.0
        %1165 = vmatprep.subr.mxu0 0.0
        %1166 = vmatpush1.msra.mxu0 0.0
        %1167 = vmatprep.subr.mxu0 0.0
        %1168 = vmatpush1.msra.mxu0 0.0
        %1169 = vmatprep.subr.mxu0 0.0
        %1170 = vmatpush1.msra.mxu0 0.0
        %1171 = vmatprep.subr.mxu0 0.0
        %1172 = vmatpush1.msra.mxu0 0.0
        %1173 = vmatprep.subr.mxu0 0.0
        %1174 = vmatpush1.msra.mxu0 0.0
        %1175 = vmatprep.subr.mxu0 0.0
        %1176 = vmatpush1.msra.mxu0 0.0
        %1177 = vmatprep.subr.mxu0 0.0
        %1178 = vmatpush1.msra.mxu0 0.0
        %1179 = vmatprep.subr.mxu0 0.0
        %1180 = vmatpush1.msra.mxu0 0.0
        %1181 = vmatprep.subr.mxu0 0.0
        %1182 = vmatpush1.msra.mxu0 0.0
        %1183 = vmatprep.mubr.f32.mxu0 0.0
        %1184 = vmatmul.mubr.f32.gmra.mrb[0].mxu0 %v1104
        %v1185 = vpop.f32.mrb[0].mxu0
        %v1186 = vadd.f32 %v660, %v1185
        %v1187 = vpop.f32.mrb[0].mxu0
        %v1188 = vadd.f32 %v662, %v1187
        %1189 = vmatprep.mubr.f32.mxu0 0.0
        %1190 = vmatmul.mubr.f32.gmra.mrb[0].mxu0 %v1107
        %v1191 = vpop.f32.mrb[0].mxu0
        %v1192 = vadd.f32 %v666, %v1191
        %v1193 = vpop.f32.mrb[0].mxu0
        %v1194 = vadd.f32 %v668, %v1193
        %1195 = vmatprep.mubr.f32.mxu0 0.0
        %1196 = vmatmul.mubr.f32.gmra.mrb[0].mxu0 %v1110
        %v1197 = vpop.f32.mrb[0].mxu0
        %v1198 = vadd.f32 %v672, %v1197
        %v1199 = vpop.f32.mrb[0].mxu0
        %v1200 = vadd.f32 %v674, %v1199
        %1201 = vmatprep.mubr.f32.mxu0 0.0
        %1202 = vmatmul.mubr.f32.gmra.mrb[0].mxu0 %v1113
        %v1203 = vpop.f32.mrb[0].mxu0
        %v1204 = vadd.f32 %v678, %v1203
        %v1205 = vpop.f32.mrb[0].mxu0
        %v1206 = vadd.f32 %v680, %v1205
        %1207 = vdwg.mxu0
        %v1208 = vmax.f32 %v1186, 0.0
        %v1209 = vmax.f32 %v1188, 0.0
        %v1210 = vmax.f32 %v1192, 0.0
        %v1211 = vmax.f32 %v1194, 0.0
        %v1212 = vmax.f32 %v1198, 0.0
        %v1213 = vmax.f32 %v1200, 0.0
        %v1214 = vmax.f32 %v1204, 0.0
        %v1215 = vmax.f32 %v1206, 0.0
        %s1216 = scalar_lea.vmem %s5, 32
        %v1217 = vld [vmem:[%s1216] sm:$0xff]
        %v1218 = vld [vmem:[%s1216 + $0x8] sm:$0xff]
        %v1219 = vld [vmem:[%s1216 + $0x10] sm:$0xff]
        %v1220 = vld [vmem:[%s1216 + $0x18] sm:$0xff]
        %s1221 = scalar_lea.vmem %s6, 32
        %v1222 = vld [vmem:[%s1221] sm:$0xff]
        %v1223 = vld [vmem:[%s1221 + $0x8] sm:$0xff]
        %v1224 = vld [vmem:[%s1221 + $0x10] sm:$0xff]
        %v1225 = vld [vmem:[%s1221 + $0x18] sm:$0xff]
        %1227 = vset.pattern.permute.xlu0 0
        %1228 = vperm.xlu0 %1227, %v1222
        %v1229 = vpop.permute.xlu0 %1228
        %1232 = vset.pattern.permute.xlu0 0
        %1233 = vperm.xlu0 %1232, %v1223
        %v1234 = vpop.permute.xlu0 %1233
        %1237 = vset.pattern.permute.xlu0 0
        %1238 = vperm.xlu0 %1237, %v1224
        %v1239 = vpop.permute.xlu0 %1238
        %1242 = vset.pattern.permute.xlu0 0
        %1243 = vperm.xlu0 %1242, %v1225
        %v1244 = vpop.permute.xlu0 %1243
        %v1247 = vsel %vm855, %v1217, 0
        %v1250 = vsel %vm855, %v1218, 0
        %v1253 = vsel %vm855, %v1219, 0
        %v1256 = vsel %vm855, %v1220, 0
        %1258 = vmatprep.subr.mxu0 %v1209
        %1259 = vmatpush1.msra.mxu0 %v1208
        %1260 = vmatprep.subr.mxu0 %v1211
        %1261 = vmatpush1.msra.mxu0 %v1210
        %1262 = vmatprep.subr.mxu0 %v1213
        %1263 = vmatpush1.msra.mxu0 %v1212
        %1264 = vmatprep.subr.mxu0 %v1215
        %1265 = vmatpush1.msra.mxu0 %v1214
        %1266 = vmatprep.subr.mxu0 0.0
        %1267 = vmatpush1.msra.mxu0 0.0
        %1268 = vmatprep.subr.mxu0 0.0
        %1269 = vmatpush1.msra.mxu0 0.0
        %1270 = vmatprep.subr.mxu0 0.0
        %1271 = vmatpush1.msra.mxu0 0.0
        %1272 = vmatprep.subr.mxu0 0.0
        %1273 = vmatpush1.msra.mxu0 0.0
        %1274 = vmatprep.subr.mxu0 0.0
        %1275 = vmatpush1.msra.mxu0 0.0
        %1276 = vmatprep.subr.mxu0 0.0
        %1277 = vmatpush1.msra.mxu0 0.0
        %1278 = vmatprep.subr.mxu0 0.0
        %1279 = vmatpush1.msra.mxu0 0.0
        %1280 = vmatprep.subr.mxu0 0.0
        %1281 = vmatpush1.msra.mxu0 0.0
        %1282 = vmatprep.subr.mxu0 0.0
        %1283 = vmatpush1.msra.mxu0 0.0
        %1284 = vmatprep.subr.mxu0 0.0
        %1285 = vmatpush1.msra.mxu0 0.0
        %1286 = vmatprep.subr.mxu0 0.0
        %1287 = vmatpush1.msra.mxu0 0.0
        %1288 = vmatprep.subr.mxu0 0.0
        %1289 = vmatpush1.msra.mxu0 0.0
        %1290 = vmatprep.subr.mxu0 0.0
        %1291 = vmatpush1.msra.mxu0 0.0
        %1292 = vmatprep.subr.mxu0 0.0
        %1293 = vmatpush1.msra.mxu0 0.0
        %1294 = vmatprep.subr.mxu0 0.0
        %1295 = vmatpush1.msra.mxu0 0.0
        %1296 = vmatprep.subr.mxu0 0.0
        %1297 = vmatpush1.msra.mxu0 0.0
        %1298 = vmatprep.subr.mxu0 0.0
        %1299 = vmatpush1.msra.mxu0 0.0
        %1300 = vmatprep.subr.mxu0 0.0
        %1301 = vmatpush1.msra.mxu0 0.0
        %1302 = vmatprep.subr.mxu0 0.0
        %1303 = vmatpush1.msra.mxu0 0.0
        %1304 = vmatprep.subr.mxu0 0.0
        %1305 = vmatpush1.msra.mxu0 0.0
        %1306 = vmatprep.subr.mxu0 0.0
        %1307 = vmatpush1.msra.mxu0 0.0
        %1308 = vmatprep.subr.mxu0 0.0
        %1309 = vmatpush1.msra.mxu0 0.0
        %1310 = vmatprep.subr.mxu0 0.0
        %1311 = vmatpush1.msra.mxu0 0.0
        %1312 = vmatprep.subr.mxu0 0.0
        %1313 = vmatpush1.msra.mxu0 0.0
        %1314 = vmatprep.subr.mxu0 0.0
        %1315 = vmatpush1.msra.mxu0 0.0
        %1316 = vmatprep.subr.mxu0 0.0
        %1317 = vmatpush1.msra.mxu0 0.0
        %1318 = vmatprep.subr.mxu0 0.0
        %1319 = vmatpush1.msra.mxu0 0.0
        %1320 = vmatprep.subr.mxu0 0.0
        %1321 = vmatpush1.msra.mxu0 0.0
        %1322 = vmatprep.mubr.f32.mxu0 0.0
        %1323 = vmatmul.mubr.f32.gmra.mrb[0].mxu0 %v1247
        %v1324 = vpop.f32.mrb[0].mxu0
        %v1325 = vadd.f32 %v1229, %v1324
        %v1326 = vpop.f32.mrb[0].mxu0
        %v1327 = vadd.f32 %v1229, %v1326
        %1328 = vmatprep.mubr.f32.mxu0 0.0
        %1329 = vmatmul.mubr.f32.gmra.mrb[0].mxu0 %v1250
        %v1330 = vpop.f32.mrb[0].mxu0
        %v1331 = vadd.f32 %v1234, %v1330
        %v1332 = vpop.f32.mrb[0].mxu0
        %v1333 = vadd.f32 %v1234, %v1332
        %1334 = vmatprep.mubr.f32.mxu0 0.0
        %1335 = vmatmul.mubr.f32.gmra.mrb[0].mxu0 %v1253
        %v1336 = vpop.f32.mrb[0].mxu0
        %v1337 = vadd.f32 %v1239, %v1336
        %v1338 = vpop.f32.mrb[0].mxu0
        %v1339 = vadd.f32 %v1239, %v1338
        %1340 = vmatprep.mubr.f32.mxu0 0.0
        %1341 = vmatmul.mubr.f32.gmra.mrb[0].mxu0 %v1256
        %v1342 = vpop.f32.mrb[0].mxu0
        %v1343 = vadd.f32 %v1244, %v1342
        %v1344 = vpop.f32.mrb[0].mxu0
        %v1345 = vadd.f32 %v1244, %v1344
        %1346 = vdwg.mxu0
        %v1347 = vmax.f32 %v1325, 0.0
        %v1348 = vmax.f32 %v1327, 0.0
        %v1349 = vmax.f32 %v1331, 0.0
        %v1350 = vmax.f32 %v1333, 0.0
        %v1351 = vmax.f32 %v1337, 0.0
        %v1352 = vmax.f32 %v1339, 0.0
        %v1353 = vmax.f32 %v1343, 0.0
        %v1354 = vmax.f32 %v1345, 0.0
        %s1355 = scalar_lea.vmem %s7, 8
        %v1356 = vld [vmem:[%s1355] sm:$0xff]
        %s1357 = scalar_lea.vmem %s8, 8
        %v1358 = vld [vmem:[%s1357] sm:$0xff]
        %1360 = vset.pattern.permute.xlu0 0
        %1361 = vperm.xlu0 %1360, %v1358
        %v1362 = vpop.permute.xlu0 %1361
        %v1365 = vsel %vm855, %v1356, 0
        %1367 = vmatprep.subr.mxu0 %v1348
        %1368 = vmatpush1.msra.mxu0 %v1347
        %1369 = vmatprep.subr.mxu0 %v1350
        %1370 = vmatpush1.msra.mxu0 %v1349
        %1371 = vmatprep.subr.mxu0 %v1352
        %1372 = vmatpush1.msra.mxu0 %v1351
        %1373 = vmatprep.subr.mxu0 %v1354
        %1374 = vmatpush1.msra.mxu0 %v1353
        %1375 = vmatprep.subr.mxu0 0.0
        %1376 = vmatpush1.msra.mxu0 0.0
        %1377 = vmatprep.subr.mxu0 0.0
        %1378 = vmatpush1.msra.mxu0 0.0
        %1379 = vmatprep.subr.mxu0 0.0
        %1380 = vmatpush1.msra.mxu0 0.0
        %1381 = vmatprep.subr.mxu0 0.0
        %1382 = vmatpush1.msra.mxu0 0.0
        %1383 = vmatprep.subr.mxu0 0.0
        %1384 = vmatpush1.msra.mxu0 0.0
        %1385 = vmatprep.subr.mxu0 0.0
        %1386 = vmatpush1.msra.mxu0 0.0
        %1387 = vmatprep.subr.mxu0 0.0
        %1388 = vmatpush1.msra.mxu0 0.0
        %1389 = vmatprep.subr.mxu0 0.0
        %1390 = vmatpush1.msra.mxu0 0.0
        %1391 = vmatprep.subr.mxu0 0.0
        %1392 = vmatpush1.msra.mxu0 0.0
        %1393 = vmatprep.subr.mxu0 0.0
        %1394 = vmatpush1.msra.mxu0 0.0
        %1395 = vmatprep.subr.mxu0 0.0
        %1396 = vmatpush1.msra.mxu0 0.0
        %1397 = vmatprep.subr.mxu0 0.0
        %1398 = vmatpush1.msra.mxu0 0.0
        %1399 = vmatprep.subr.mxu0 0.0
        %1400 = vmatpush1.msra.mxu0 0.0
        %1401 = vmatprep.subr.mxu0 0.0
        %1402 = vmatpush1.msra.mxu0 0.0
        %1403 = vmatprep.subr.mxu0 0.0
        %1404 = vmatpush1.msra.mxu0 0.0
        %1405 = vmatprep.subr.mxu0 0.0
        %1406 = vmatpush1.msra.mxu0 0.0
        %1407 = vmatprep.subr.mxu0 0.0
        %1408 = vmatpush1.msra.mxu0 0.0
        %1409 = vmatprep.subr.mxu0 0.0
        %1410 = vmatpush1.msra.mxu0 0.0
        %1411 = vmatprep.subr.mxu0 0.0
        %1412 = vmatpush1.msra.mxu0 0.0
        %1413 = vmatprep.subr.mxu0 0.0
        %1414 = vmatpush1.msra.mxu0 0.0
        %1415 = vmatprep.subr.mxu0 0.0
        %1416 = vmatpush1.msra.mxu0 0.0
        %1417 = vmatprep.subr.mxu0 0.0
        %1418 = vmatpush1.msra.mxu0 0.0
        %1419 = vmatprep.subr.mxu0 0.0
        %1420 = vmatpush1.msra.mxu0 0.0
        %1421 = vmatprep.subr.mxu0 0.0
        %1422 = vmatpush1.msra.mxu0 0.0
        %1423 = vmatprep.subr.mxu0 0.0
        %1424 = vmatpush1.msra.mxu0 0.0
        %1425 = vmatprep.subr.mxu0 0.0
        %1426 = vmatpush1.msra.mxu0 0.0
        %1427 = vmatprep.subr.mxu0 0.0
        %1428 = vmatpush1.msra.mxu0 0.0
        %1429 = vmatprep.subr.mxu0 0.0
        %1430 = vmatpush1.msra.mxu0 0.0
        %1431 = vmatprep.mubr.f32.mxu0 0.0
        %1432 = vmatmul.mubr.f32.gmra.mrb[0].mxu0 %v1365
        %v1433 = vpop.f32.mrb[0].mxu0
        %v1434 = vadd.f32 %v1362, %v1433
        %v1435 = vpop.f32.mrb[0].mxu0
        %v1436 = vadd.f32 %v1362, %v1435
        %1437 = vdwg.mxu0
        %v1438 = vmax.f32 %v1434, 0.0
        %v1439 = vmax.f32 %v1436, 0.0
        %v1440 = vtanh.pop %v1438
        %v1441 = vtanh.pop %v1439
        %v1442 = vmul.f32 %v1440, 2.0
        %v1443 = vmul.f32 %v1441, 2.0
        %v1444 = vmul.f32 %v1442, 1.442695
        %v1445 = vpow.pop %v1444
        %v1446 = vmul.f32 %v1443, 1.442695
        %v1447 = vpow.pop %v1446
        %v1450 = vcombine.low %v1445, %v1447
        %v1452 = vmul.f32 %v1095, %v1450
        %v1455 = vcombine.high %v1438, %v1439
        %v1457 = vadd.f32 %v1452, %v1455
        %v1458 = vadd.f32 %v1066, %v1442
        %v1459 = vadd.f32 %v1067, %v1443
        %s1460 = scalar_lea.vmem %s9, 4
        %v1461 = vld [vmem:[%s1460] sm:$0xf]
        %1463 = vset.pattern.permute.xlu0 0
        %1464 = vperm.xlu0 %1463, %v1461
        %v1465 = vpop.permute.xlu0 %1464
        %v1467 = vunpack.c.l.s4 839922192
        %v1468 = vunpack.c.0.s8 %v1467
        %v1469 = vlaneseq
        %v1470 = vshrl.u32 %v1469, 7
        %v1471 = vsub.s32 %v1468, %v1470
        %v1472 = vrot.slane %v1465, %v1471
        %v1474 = vmul.f32 %v1457, %v1472
        %s1475 = scalar_lea.vmem %s10, 4
        %v1476 = vld [vmem:[%s1475] sm:$0xf]
        %1478 = vset.pattern.permute.xlu0 0
        %1479 = vperm.xlu0 %1478, %v1476
        %v1480 = vpop.permute.xlu0 %1479
        %v1482 = vunpack.c.l.s4 839922192
        %v1483 = vunpack.c.0.s8 %v1482
        %v1484 = vlaneseq
        %v1485 = vshrl.u32 %v1484, 7
        %v1486 = vsub.s32 %v1483, %v1485
        %v1487 = vrot.slane %v1480, %v1486
        %v1489 = vadd.f32 %v1474, %v1487
        %s1490 = scalar_lea.vmem %s2, 64
        %v1491 = vld [vmem:[%s1490] sm:$0xff]
        %v1492 = vld [vmem:[%s1490 + $0x8] sm:$0xff]
        %v1493 = vld [vmem:[%s1490 + $0x10] sm:$0xff]
        %v1494 = vld [vmem:[%s1490 + $0x18] sm:$0xff]
        %v1496 = vcombine.high %v1489, %v1489
        %v1498 = vsel %vm712, %v1491, 0
        %v1501 = vsel %vm712, %v1492, 0
        %v1504 = vsel %vm712, %v1493, 0
        %v1507 = vsel %vm712, %v1494, 0
        %v1509 = vsel %vm725, %v1489, 0
        %v1511 = vsel %vm725, %v1496, 0
        %1513 = vmatprep.subr.mxu0 %v1511
        %1514 = vmatpush1.msra.mxu0 %v1509
        %1515 = vmatprep.subr.mxu0 0.0
        %1516 = vmatpush1.msra.mxu0 0.0
        %1517 = vmatprep.subr.mxu0 0.0
        %1518 = vmatpush1.msra.mxu0 0.0
        %1519 = vmatprep.subr.mxu0 0.0
        %1520 = vmatpush1.msra.mxu0 0.0
        %1521 = vmatprep.subr.mxu0 0.0
        %1522 = vmatpush1.msra.mxu0 0.0
        %1523 = vmatprep.subr.mxu0 0.0
        %1524 = vmatpush1.msra.mxu0 0.0
        %1525 = vmatprep.subr.mxu0 0.0
        %1526 = vmatpush1.msra.mxu0 0.0
        %1527 = vmatprep.subr.mxu0 0.0
        %1528 = vmatpush1.msra.mxu0 0.0
        %1529 = vmatprep.subr.mxu0 0.0
        %1530 = vmatpush1.msra.mxu0 0.0
        %1531 = vmatprep.subr.mxu0 0.0
        %1532 = vmatpush1.msra.mxu0 0.0
        %1533 = vmatprep.subr.mxu0 0.0
        %1534 = vmatpush1.msra.mxu0 0.0
        %1535 = vmatprep.subr.mxu0 0.0
        %1536 = vmatpush1.msra.mxu0 0.0
        %1537 = vmatprep.subr.mxu0 0.0
        %1538 = vmatpush1.msra.mxu0 0.0
        %1539 = vmatprep.subr.mxu0 0.0
        %1540 = vmatpush1.msra.mxu0 0.0
        %1541 = vmatprep.subr.mxu0 0.0
        %1542 = vmatpush1.msra.mxu0 0.0
        %1543 = vmatprep.subr.mxu0 0.0
        %1544 = vmatpush1.msra.mxu0 0.0
        %1545 = vmatprep.subr.mxu0 0.0
        %1546 = vmatpush1.msra.mxu0 0.0
        %1547 = vmatprep.subr.mxu0 0.0
        %1548 = vmatpush1.msra.mxu0 0.0
        %1549 = vmatprep.subr.mxu0 0.0
        %1550 = vmatpush1.msra.mxu0 0.0
        %1551 = vmatprep.subr.mxu0 0.0
        %1552 = vmatpush1.msra.mxu0 0.0
        %1553 = vmatprep.subr.mxu0 0.0
        %1554 = vmatpush1.msra.mxu0 0.0
        %1555 = vmatprep.subr.mxu0 0.0
        %1556 = vmatpush1.msra.mxu0 0.0
        %1557 = vmatprep.subr.mxu0 0.0
        %1558 = vmatpush1.msra.mxu0 0.0
        %1559 = vmatprep.subr.mxu0 0.0
        %1560 = vmatpush1.msra.mxu0 0.0
        %1561 = vmatprep.subr.mxu0 0.0
        %1562 = vmatpush1.msra.mxu0 0.0
        %1563 = vmatprep.subr.mxu0 0.0
        %1564 = vmatpush1.msra.mxu0 0.0
        %1565 = vmatprep.subr.mxu0 0.0
        %1566 = vmatpush1.msra.mxu0 0.0
        %1567 = vmatprep.subr.mxu0 0.0
        %1568 = vmatpush1.msra.mxu0 0.0
        %1569 = vmatprep.subr.mxu0 0.0
        %1570 = vmatpush1.msra.mxu0 0.0
        %1571 = vmatprep.subr.mxu0 0.0
        %1572 = vmatpush1.msra.mxu0 0.0
        %1573 = vmatprep.subr.mxu0 0.0
        %1574 = vmatpush1.msra.mxu0 0.0
        %1575 = vmatprep.subr.mxu0 0.0
        %1576 = vmatpush1.msra.mxu0 0.0
        %1577 = vmatprep.mubr.f32.mxu0 0.0
        %1578 = vmatmul.mubr.f32.gmra.mrb[0].mxu0 %v1498
        %v1579 = vpop.f32.mrb[0].mxu0
        %v1580 = vadd.f32 %v684, %v1579
        %v1581 = vpop.f32.mrb[0].mxu0
        %v1582 = vadd.f32 %v686, %v1581
        %1583 = vmatprep.mubr.f32.mxu0 0.0
        %1584 = vmatmul.mubr.f32.gmra.mrb[0].mxu0 %v1501
        %v1585 = vpop.f32.mrb[0].mxu0
        %v1586 = vadd.f32 %v690, %v1585
        %v1587 = vpop.f32.mrb[0].mxu0
        %v1588 = vadd.f32 %v692, %v1587
        %1589 = vmatprep.mubr.f32.mxu0 0.0
        %1590 = vmatmul.mubr.f32.gmra.mrb[0].mxu0 %v1504
        %v1591 = vpop.f32.mrb[0].mxu0
        %v1592 = vadd.f32 %v696, %v1591
        %v1593 = vpop.f32.mrb[0].mxu0
        %v1594 = vadd.f32 %v698, %v1593
        %1595 = vmatprep.mubr.f32.mxu0 0.0
        %1596 = vmatmul.mubr.f32.gmra.mrb[0].mxu0 %v1507
        %v1597 = vpop.f32.mrb[0].mxu0
        %v1598 = vadd.f32 %v702, %v1597
        %v1599 = vpop.f32.mrb[0].mxu0
        %v1600 = vadd.f32 %v704, %v1599
        %1601 = vdwg.mxu0
        %v1602 = vmax.f32 %v1580, 0.0
        %v1603 = vmax.f32 %v1582, 0.0
        %v1604 = vmax.f32 %v1586, 0.0
        %v1605 = vmax.f32 %v1588, 0.0
        %v1606 = vmax.f32 %v1592, 0.0
        %v1607 = vmax.f32 %v1594, 0.0
        %v1608 = vmax.f32 %v1598, 0.0
        %v1609 = vmax.f32 %v1600, 0.0
        %s1610 = scalar_lea.vmem %s5, 64
        %v1611 = vld [vmem:[%s1610] sm:$0xff]
        %v1612 = vld [vmem:[%s1610 + $0x8] sm:$0xff]
        %v1613 = vld [vmem:[%s1610 + $0x10] sm:$0xff]
        %v1614 = vld [vmem:[%s1610 + $0x18] sm:$0xff]
        %s1615 = scalar_lea.vmem %s6, 64
        %v1616 = vld [vmem:[%s1615] sm:$0xff]
        %v1617 = vld [vmem:[%s1615 + $0x8] sm:$0xff]
        %v1618 = vld [vmem:[%s1615 + $0x10] sm:$0xff]
        %v1619 = vld [vmem:[%s1615 + $0x18] sm:$0xff]
        %1621 = vset.pattern.permute.xlu0 0
        %1622 = vperm.xlu0 %1621, %v1616
        %v1623 = vpop.permute.xlu0 %1622
        %1626 = vset.pattern.permute.xlu0 0
        %1627 = vperm.xlu0 %1626, %v1617
        %v1628 = vpop.permute.xlu0 %1627
        %1631 = vset.pattern.permute.xlu0 0
        %1632 = vperm.xlu0 %1631, %v1618
        %v1633 = vpop.permute.xlu0 %1632
        %1636 = vset.pattern.permute.xlu0 0
        %1637 = vperm.xlu0 %1636, %v1619
        %v1638 = vpop.permute.xlu0 %1637
        %v1641 = vsel %vm855, %v1611, 0
        %v1644 = vsel %vm855, %v1612, 0
        %v1647 = vsel %vm855, %v1613, 0
        %v1650 = vsel %vm855, %v1614, 0
        %1652 = vmatprep.subr.mxu0 %v1603
        %1653 = vmatpush1.msra.mxu0 %v1602
        %1654 = vmatprep.subr.mxu0 %v1605
        %1655 = vmatpush1.msra.mxu0 %v1604
        %1656 = vmatprep.subr.mxu0 %v1607
        %1657 = vmatpush1.msra.mxu0 %v1606
        %1658 = vmatprep.subr.mxu0 %v1609
        %1659 = vmatpush1.msra.mxu0 %v1608
        %1660 = vmatprep.subr.mxu0 0.0
        %1661 = vmatpush1.msra.mxu0 0.0
        %1662 = vmatprep.subr.mxu0 0.0
        %1663 = vmatpush1.msra.mxu0 0.0
        %1664 = vmatprep.subr.mxu0 0.0
        %1665 = vmatpush1.msra.mxu0 0.0
        %1666 = vmatprep.subr.mxu0 0.0
        %1667 = vmatpush1.msra.mxu0 0.0
        %1668 = vmatprep.subr.mxu0 0.0
        %1669 = vmatpush1.msra.mxu0 0.0
        %1670 = vmatprep.subr.mxu0 0.0
        %1671 = vmatpush1.msra.mxu0 0.0
        %1672 = vmatprep.subr.mxu0 0.0
        %1673 = vmatpush1.msra.mxu0 0.0
        %1674 = vmatprep.subr.mxu0 0.0
        %1675 = vmatpush1.msra.mxu0 0.0
        %1676 = vmatprep.subr.mxu0 0.0
        %1677 = vmatpush1.msra.mxu0 0.0
        %1678 = vmatprep.subr.mxu0 0.0
        %1679 = vmatpush1.msra.mxu0 0.0
        %1680 = vmatprep.subr.mxu0 0.0
        %1681 = vmatpush1.msra.mxu0 0.0
        %1682 = vmatprep.subr.mxu0 0.0
        %1683 = vmatpush1.msra.mxu0 0.0
        %1684 = vmatprep.subr.mxu0 0.0
        %1685 = vmatpush1.msra.mxu0 0.0
        %1686 = vmatprep.subr.mxu0 0.0
        %1687 = vmatpush1.msra.mxu0 0.0
        %1688 = vmatprep.subr.mxu0 0.0
        %1689 = vmatpush1.msra.mxu0 0.0
        %1690 = vmatprep.subr.mxu0 0.0
        %1691 = vmatpush1.msra.mxu0 0.0
        %1692 = vmatprep.subr.mxu0 0.0
        %1693 = vmatpush1.msra.mxu0 0.0
        %1694 = vmatprep.subr.mxu0 0.0
        %1695 = vmatpush1.msra.mxu0 0.0
        %1696 = vmatprep.subr.mxu0 0.0
        %1697 = vmatpush1.msra.mxu0 0.0
        %1698 = vmatprep.subr.mxu0 0.0
        %1699 = vmatpush1.msra.mxu0 0.0
        %1700 = vmatprep.subr.mxu0 0.0
        %1701 = vmatpush1.msra.mxu0 0.0
        %1702 = vmatprep.subr.mxu0 0.0
        %1703 = vmatpush1.msra.mxu0 0.0
        %1704 = vmatprep.subr.mxu0 0.0
        %1705 = vmatpush1.msra.mxu0 0.0
        %1706 = vmatprep.subr.mxu0 0.0
        %1707 = vmatpush1.msra.mxu0 0.0
        %1708 = vmatprep.subr.mxu0 0.0
        %1709 = vmatpush1.msra.mxu0 0.0
        %1710 = vmatprep.subr.mxu0 0.0
        %1711 = vmatpush1.msra.mxu0 0.0
        %1712 = vmatprep.subr.mxu0 0.0
        %1713 = vmatpush1.msra.mxu0 0.0
        %1714 = vmatprep.subr.mxu0 0.0
        %1715 = vmatpush1.msra.mxu0 0.0
        %1716 = vmatprep.mubr.f32.mxu0 0.0
        %1717 = vmatmul.mubr.f32.gmra.mrb[0].mxu0 %v1641
        %v1718 = vpop.f32.mrb[0].mxu0
        %v1719 = vadd.f32 %v1623, %v1718
        %v1720 = vpop.f32.mrb[0].mxu0
        %v1721 = vadd.f32 %v1623, %v1720
        %1722 = vmatprep.mubr.f32.mxu0 0.0
        %1723 = vmatmul.mubr.f32.gmra.mrb[0].mxu0 %v1644
        %v1724 = vpop.f32.mrb[0].mxu0
        %v1725 = vadd.f32 %v1628, %v1724
        %v1726 = vpop.f32.mrb[0].mxu0
        %v1727 = vadd.f32 %v1628, %v1726
        %1728 = vmatprep.mubr.f32.mxu0 0.0
        %1729 = vmatmul.mubr.f32.gmra.mrb[0].mxu0 %v1647
        %v1730 = vpop.f32.mrb[0].mxu0
        %v1731 = vadd.f32 %v1633, %v1730
        %v1732 = vpop.f32.mrb[0].mxu0
        %v1733 = vadd.f32 %v1633, %v1732
        %1734 = vmatprep.mubr.f32.mxu0 0.0
        %1735 = vmatmul.mubr.f32.gmra.mrb[0].mxu0 %v1650
        %v1736 = vpop.f32.mrb[0].mxu0
        %v1737 = vadd.f32 %v1638, %v1736
        %v1738 = vpop.f32.mrb[0].mxu0
        %v1739 = vadd.f32 %v1638, %v1738
        %1740 = vdwg.mxu0
        %v1741 = vmax.f32 %v1719, 0.0
        %v1742 = vmax.f32 %v1721, 0.0
        %v1743 = vmax.f32 %v1725, 0.0
        %v1744 = vmax.f32 %v1727, 0.0
        %v1745 = vmax.f32 %v1731, 0.0
        %v1746 = vmax.f32 %v1733, 0.0
        %v1747 = vmax.f32 %v1737, 0.0
        %v1748 = vmax.f32 %v1739, 0.0
        %s1749 = scalar_lea.vmem %s7, 16
        %v1750 = vld [vmem:[%s1749] sm:$0xff]
        %s1751 = scalar_lea.vmem %s8, 16
        %v1752 = vld [vmem:[%s1751] sm:$0xff]
        %1754 = vset.pattern.permute.xlu0 0
        %1755 = vperm.xlu0 %1754, %v1752
        %v1756 = vpop.permute.xlu0 %1755
        %v1759 = vsel %vm855, %v1750, 0
        %1761 = vmatprep.subr.mxu0 %v1742
        %1762 = vmatpush1.msra.mxu0 %v1741
        %1763 = vmatprep.subr.mxu0 %v1744
        %1764 = vmatpush1.msra.mxu0 %v1743
        %1765 = vmatprep.subr.mxu0 %v1746
        %1766 = vmatpush1.msra.mxu0 %v1745
        %1767 = vmatprep.subr.mxu0 %v1748
        %1768 = vmatpush1.msra.mxu0 %v1747
        %1769 = vmatprep.subr.mxu0 0.0
        %1770 = vmatpush1.msra.mxu0 0.0
        %1771 = vmatprep.subr.mxu0 0.0
        %1772 = vmatpush1.msra.mxu0 0.0
        %1773 = vmatprep.subr.mxu0 0.0
        %1774 = vmatpush1.msra.mxu0 0.0
        %1775 = vmatprep.subr.mxu0 0.0
        %1776 = vmatpush1.msra.mxu0 0.0
        %1777 = vmatprep.subr.mxu0 0.0
        %1778 = vmatpush1.msra.mxu0 0.0
        %1779 = vmatprep.subr.mxu0 0.0
        %1780 = vmatpush1.msra.mxu0 0.0
        %1781 = vmatprep.subr.mxu0 0.0
        %1782 = vmatpush1.msra.mxu0 0.0
        %1783 = vmatprep.subr.mxu0 0.0
        %1784 = vmatpush1.msra.mxu0 0.0
        %1785 = vmatprep.subr.mxu0 0.0
        %1786 = vmatpush1.msra.mxu0 0.0
        %1787 = vmatprep.subr.mxu0 0.0
        %1788 = vmatpush1.msra.mxu0 0.0
        %1789 = vmatprep.subr.mxu0 0.0
        %1790 = vmatpush1.msra.mxu0 0.0
        %1791 = vmatprep.subr.mxu0 0.0
        %1792 = vmatpush1.msra.mxu0 0.0
        %1793 = vmatprep.subr.mxu0 0.0
        %1794 = vmatpush1.msra.mxu0 0.0
        %1795 = vmatprep.subr.mxu0 0.0
        %1796 = vmatpush1.msra.mxu0 0.0
        %1797 = vmatprep.subr.mxu0 0.0
        %1798 = vmatpush1.msra.mxu0 0.0
        %1799 = vmatprep.subr.mxu0 0.0
        %1800 = vmatpush1.msra.mxu0 0.0
        %1801 = vmatprep.subr.mxu0 0.0
        %1802 = vmatpush1.msra.mxu0 0.0
        %1803 = vmatprep.subr.mxu0 0.0
        %1804 = vmatpush1.msra.mxu0 0.0
        %1805 = vmatprep.subr.mxu0 0.0
        %1806 = vmatpush1.msra.mxu0 0.0
        %1807 = vmatprep.subr.mxu0 0.0
        %1808 = vmatpush1.msra.mxu0 0.0
        %1809 = vmatprep.subr.mxu0 0.0
        %1810 = vmatpush1.msra.mxu0 0.0
        %1811 = vmatprep.subr.mxu0 0.0
        %1812 = vmatpush1.msra.mxu0 0.0
        %1813 = vmatprep.subr.mxu0 0.0
        %1814 = vmatpush1.msra.mxu0 0.0
        %1815 = vmatprep.subr.mxu0 0.0
        %1816 = vmatpush1.msra.mxu0 0.0
        %1817 = vmatprep.subr.mxu0 0.0
        %1818 = vmatpush1.msra.mxu0 0.0
        %1819 = vmatprep.subr.mxu0 0.0
        %1820 = vmatpush1.msra.mxu0 0.0
        %1821 = vmatprep.subr.mxu0 0.0
        %1822 = vmatpush1.msra.mxu0 0.0
        %1823 = vmatprep.subr.mxu0 0.0
        %1824 = vmatpush1.msra.mxu0 0.0
        %1825 = vmatprep.mubr.f32.mxu0 0.0
        %1826 = vmatmul.mubr.f32.gmra.mrb[0].mxu0 %v1759
        %v1827 = vpop.f32.mrb[0].mxu0
        %v1828 = vadd.f32 %v1756, %v1827
        %v1829 = vpop.f32.mrb[0].mxu0
        %v1830 = vadd.f32 %v1756, %v1829
        %1831 = vdwg.mxu0
        %v1832 = vmax.f32 %v1828, 0.0
        %v1833 = vmax.f32 %v1830, 0.0
        %v1834 = vtanh.pop %v1832
        %v1835 = vtanh.pop %v1833
        %v1836 = vmul.f32 %v1834, 2.0
        %v1837 = vmul.f32 %v1835, 2.0
        %v1838 = vmul.f32 %v1836, 1.442695
        %v1839 = vpow.pop %v1838
        %v1840 = vmul.f32 %v1837, 1.442695
        %v1841 = vpow.pop %v1840
        %v1844 = vcombine.low %v1839, %v1841
        %v1846 = vmul.f32 %v1489, %v1844
        %v1849 = vcombine.high %v1832, %v1833
        %v1851 = vadd.f32 %v1846, %v1849
        %v1852 = vadd.f32 %v1458, %v1836
        %v1853 = vadd.f32 %v1459, %v1837
        %s1854 = scalar_lea.vmem %s9, 8
        %v1855 = vld [vmem:[%s1854] sm:$0xf]
        %1857 = vset.pattern.permute.xlu0 0
        %1858 = vperm.xlu0 %1857, %v1855
        %v1859 = vpop.permute.xlu0 %1858
        %v1861 = vunpack.c.l.s4 839922192
        %v1862 = vunpack.c.0.s8 %v1861
        %v1863 = vlaneseq
        %v1864 = vshrl.u32 %v1863, 7
        %v1865 = vsub.s32 %v1862, %v1864
        %v1866 = vrot.slane %v1859, %v1865
        %v1868 = vmul.f32 %v1851, %v1866
        %s1869 = scalar_lea.vmem %s10, 8
        %v1870 = vld [vmem:[%s1869] sm:$0xf]
        %1872 = vset.pattern.permute.xlu0 0
        %1873 = vperm.xlu0 %1872, %v1870
        %v1874 = vpop.permute.xlu0 %1873
        %v1876 = vunpack.c.l.s4 839922192
        %v1877 = vunpack.c.0.s8 %v1876
        %v1878 = vlaneseq
        %v1879 = vshrl.u32 %v1878, 7
        %v1880 = vsub.s32 %v1877, %v1879
        %v1881 = vrot.slane %v1874, %v1880
        %v1883 = vadd.f32 %v1868, %v1881
        %v1884 = vsel %vm725, %v1852, 0.0
        %v1885 = vrot.slane %v1884, 4
        %v1886 = vadd.f32 %v1884, %v1885
        %v1887 = vrot.slane %v1886, 2
        %v1888 = vadd.f32 %v1886, %v1887
        %v1889 = vrot.slane %v1888, 1
        %v1890 = vadd.f32 %v1888, %v1889
        %v1891 = vsel %vm725, %v1853, 0.0
        %v1892 = vrot.slane %v1891, 4
        %v1893 = vadd.f32 %v1891, %v1892
        %v1894 = vrot.slane %v1893, 2
        %v1895 = vadd.f32 %v1893, %v1894
        %v1896 = vrot.slane %v1895, 1
        %v1897 = vadd.f32 %v1895, %v1896
        %s1898 = sld [smem:[#allocation2]]
        %v1899 = vstv %s1898
        %v1900 = vadd.f32 %v1890, %v1899
        %v1901 = vadd.f32 %v1897, %v1899
        %v1903 = vlaneseq
        %v1904 = vshrl.u32 %v1903, 7
        %v1905 = vsub.s32 0, %v1904
        %v1906 = vrot.slane %v1883, %v1905
        %v1907 = vlaneseq
        %v1908 = vshrl.u32 %v1907, 7
        %v1909 = vsub.s32 4, %v1908
        %v1910 = vrot.slane %v1883, %v1909
        %v1913 = vlaneseq
        %v1914 = vshrl.u32 %v1913, 7
        %v1915 = vsub.s32 2, %v1914
        %v1916 = vrot.slane %v1883, %v1915
        %v1917 = vlaneseq
        %v1918 = vshrl.u32 %v1917, 7
        %v1919 = vsub.s32 6, %v1918
        %v1920 = vrot.slane %v1883, %v1919
        %v1923 = vlaneseq
        %v1924 = vshrl.u32 %v1923, 7
        %v1925 = vsub.s32 3, %v1924
        %v1926 = vrot.slane %v1883, %v1925
        %v1927 = vlaneseq
        %v1928 = vshrl.u32 %v1927, 7
        %v1929 = vsub.s32 7, %v1928
        %v1930 = vrot.slane %v1883, %v1929
        %v1933 = vlaneseq
        %v1934 = vshrl.u32 %v1933, 7
        %v1935 = vsub.s32 1, %v1934
        %v1936 = vrot.slane %v1883, %v1935
        %v1937 = vlaneseq
        %v1938 = vshrl.u32 %v1937, 7
        %v1939 = vsub.s32 5, %v1938
        %v1940 = vrot.slane %v1883, %v1939
        %vm1943 = vcmask 1040384
        %v1944 = vsel %vm1943, %v1906, %v1916
        %v1945 = vsel %vm1943, %v1910, %v1920
        %vm1946 = vcmask 1041408
        %v1947 = vsel %vm1946, %v1944, %v1926
        %v1948 = vsel %vm1946, %v1945, %v1930
        %vm1949 = vcmask 1042432
        %v1950 = vsel %vm1949, %v1947, %v1936
        %v1951 = vsel %vm1949, %v1948, %v1940
        %v1952 = vsel %vm725, %v1950, %v1900
        %v1953 = vsel %vm725, %v1951, %v1901
        %1954 = vst [vmem:[%s424] sm:$0x1f] %v1952
        %1955 = vst [vmem:[%s424 + $0x8] sm:$0x1f] %v1953
        %s1956 = sand.u32 %s297, 1
        %s1957 = scalar_lea.sflag [#allocation4], %s1956
        %s1958 = sand.u32 %s297, 1
        %s1959 = smul.addr %s1958, 16
        %s1960 = scalar_lea.vmem [#allocation3], %s1959
        // Predicated region
        $region69: #{tpu_custom_call.1} parent=67 // pred_check
          %p1961 = pneg %p307
        $region70: #{tpu_custom_call.1} parent=67 // pred_check_branch
          %1963 = sbr.rel (%p1961) target = $region72
        $region71: #{tpu_custom_call.1} parent=67 // pred_region
          %s1964 = smul.u32 2, %s27
          %s1966 = ssub.s32 256, 256
          %1967 = vsyncadd %s1957, %s1966
          %s1968 = smul.addr %s1964, 128
          %s1969 = scalar_lea.hbm %s12, %s1968
          %s1971 = sshll.u32 %s1960, 4
          %s1972 = int_to_ptr.vmem [resolvable:$true] %s1971
          %1974 = dma.vmem_to_hbm [thread:$0]  %s1972, 256, %s1969, %s1957
        $region72: #{tpu_custom_call.1} parent=67 // pred_fallthru
          _
      $region68: #{tpu_custom_call.1} parent=5 // pred_fallthru
        _
      %p1975 = scmp.le.s32.totalorder 2, %s22
      // Predicated region
      $region73: #{tpu_custom_call.1} parent=5 // pred_check
        %p1976 = pneg %p1975
      $region74: #{tpu_custom_call.1} parent=5 // pred_check_branch
        %1978 = sbr.rel (%p1976) target = $region76
      $region75: #{tpu_custom_call.1} parent=5 // pred_region
        %s1979 = ssub.s32 %s22, 2
        // Predicated region
        $region77: #{tpu_custom_call.1} parent=75 // pred_check
          %p1980 = pneg %p313
        $region78: #{tpu_custom_call.1} parent=75 // pred_check_branch
          %1982 = sbr.rel (%p1980) target = $region80
        $region79: #{tpu_custom_call.1} parent=75 // pred_region
          %s1983 = sand.u32 %s298, 1
          %s1984 = scalar_lea.sflag [#allocation4], %s1983
          %s1985 = sand.u32 %s298, 1
          %s1986 = smul.addr %s1985, 16
          %s1987 = scalar_lea.vmem [#allocation3], %s1986
          %1988 = dma.done %s1984, 256
        $region80: #{tpu_custom_call.1} parent=75 // pred_fallthru
          _
      $region76: #{tpu_custom_call.1} parent=5 // pred_fallthru
        _
    $region6: #{tpu_custom_call.1} parent=1 // loop_footer
      %s26 = sadd.s32 1, %s22
    $region7: #{tpu_custom_call.1} parent=1 // loop_footer_branch
      %21 = sbr.rel target = $region3
    $region8: #{tpu_custom_call.1} parent=1 // loop_exit
      _
    %1989 = vsyncpa [#allocation4], 1
    %s1990 = scalar_lea.sflag [#allocation4], 1
    %1991 = vsyncpa %s1990, 1

</llo_original>
